<compile_context>
chip_gen: v6e
topology: v6e:2x2x1
jax: 0.10.0
libtpu: 0.0.40
codegen_flags: <defaults>
</compile_context>

<pallas_src>
import functools

import jax
import jax.numpy as jnp
from jax import lax
from jax.experimental import pallas as pl
from jax.experimental.pallas import tpu as pltpu


def _lstm_kernel(x_ref, wih_ref, whh_ref, b_ref, h_out_ref,
                 xp_ref, h_ref, c_ref, *, chunk_T, hidden, unroll):
    """One (batch_block, time_chunk) grid step.

    x_ref   : (chunk_T, Bblk, I)  bf16  time-major input chunk
    wih_ref : (I, 4H)             bf16  input weights  (gate order i,f,o,g)
    whh_ref : (H, 4H)             bf16  recurrent weights (gate order i,f,o,g)
    b_ref   : (1, 4H)             f32   combined bias (gate order i,f,o,g)
    h_out   : (Bblk, H)           f32   final hidden state for this batch block
    xp_ref  : (chunk_T, Bblk, 4H) bf16  scratch: hoisted input projection
    h_ref   : (Bblk, H)           f32   scratch: hidden-state carry
    c_ref   : (Bblk, H)           f32   scratch: cell-state carry
    """
    t_idx = pl.program_id(1)
    b_blk = x_ref.shape[1]
    in_size = x_ref.shape[2]
    four_h = 4 * hidden

    @pl.when(t_idx == 0)
    def _init():
        h_ref[...] = jnp.zeros_like(h_ref)
        c_ref[...] = jnp.zeros_like(c_ref)

    # ---- Hoisted input projection: one well-shaped MXU matmul per chunk.
    x2d = x_ref[...].reshape(chunk_T * b_blk, in_size)
    xp = jnp.dot(x2d, wih_ref[...], preferred_element_type=jnp.float32)
    xp_ref[...] = xp.reshape(chunk_T, b_blk, four_h).astype(jnp.bfloat16)

    whh = whh_ref[...]          # resident bf16 recurrent weights
    bias = b_ref[...]           # f32 bias, added at consume time

    # ---- Serial recurrence: only h @ W_hh^T + gate elementwise math per step.
    def step(t, carry):
        h, c = carry
        gates = (xp_ref[t].astype(jnp.float32) + bias
                 + jnp.dot(h.astype(jnp.bfloat16), whh,
                           preferred_element_type=jnp.float32))
        ifo = jax.nn.sigmoid(gates[:, :3 * hidden])    # one wide sigmoid (B,3H)
        g = jnp.tanh(gates[:, 3 * hidden:])            # one tanh (B,H)
        i = ifo[:, :hidden]
        f = ifo[:, hidden:2 * hidden]
        o = ifo[:, 2 * hidden:]
        c_new = f * c + i * g                          # f32 elementwise
        h_new = o * jnp.tanh(c_new)
        return h_new, c_new

    h_fin, c_fin = lax.fori_loop(0, chunk_T, step, (h_ref[...], c_ref[...]),
                                 unroll=unroll)
    h_ref[...] = h_fin
    c_ref[...] = c_fin

    @pl.when(t_idx == pl.num_programs(1) - 1)
    def _finalize():
        h_out_ref[...] = h_fin


def _permute_gates(p):
    # PyTorch LSTMCell gate order along the 4H axis is (i, f, g, o);
    # reorder to (i, f, o, g) so sigmoid/tanh each get one contiguous slice.
    i, f, g, o = jnp.split(p, 4, axis=0)
    return jnp.concatenate([i, f, o, g], axis=0)


def lstm_forward(x, w_ih, w_hh, b_ih, b_hh, *, vmem_budget_bytes=20 << 20):
    """x: (B, T, in_size) float32. Returns final hidden state (B, hidden) f32."""
    B, T, in_size = x.shape
    four_h = w_ih.shape[0]
    hidden = four_h // 4

    # bf16 matmul operands (f32 accumulation in-kernel), gate order (i,f,o,g).
    wih_t = jnp.transpose(_permute_gates(w_ih)).astype(jnp.bfloat16)   # (I, 4H)
    whh_t = jnp.transpose(_permute_gates(w_hh)).astype(jnp.bfloat16)   # (H, 4H)
    b = _permute_gates(b_ih + b_hh).reshape(1, four_h).astype(jnp.float32)

    # Time-major bf16 input (single fused transpose+cast pass in XLA).
    x_tm = jnp.transpose(x, (1, 0, 2)).astype(jnp.bfloat16)            # (T,B,I)

    # Batch block: split across TensorCores (v7x) only when blocks stay a
    # multiple of 8 sublanes; otherwise one full-batch block.
    if B >= 16 and B % 16 == 0:
        b_blk = B // 2
    else:
        b_blk = B
    n_b = B // b_blk

    # Time chunk: largest divisor of T whose working set fits the VMEM budget
    # (x double-buffer in bf16 + bf16 xp scratch per step).
    per_step = b_blk * in_size * 2 * 2 + b_blk * four_h * 2
    max_chunk = max(1, vmem_budget_bytes // per_step)
    chunk_T = 1
    for d in range(1, T + 1):
        if T % d == 0 and d <= max_chunk:
            chunk_T = d
    n_t = T // chunk_T
    unroll = int(min(chunk_T, 8))

    # Explicit scoped-VMEM limit (defaults are 16/32 MiB on v5e / v6e-v7x).
    est = ((in_size + hidden) * four_h * 2 + four_h * 4     # weights + bias
           + 2 * chunk_T * b_blk * in_size * 2              # x double buffer
           + chunk_T * b_blk * four_h * 2                   # xp scratch (bf16)
           + 5 * b_blk * hidden * 4)                        # h, c, out (+margin)
    vmem_limit = int(min(64 << 20, max(32 << 20, 2 * est)))

    kernel = functools.partial(_lstm_kernel, chunk_T=chunk_T, hidden=hidden,
                               unroll=unroll)

    return pl.pallas_call(
        kernel,
        out_shape=jax.ShapeDtypeStruct((B, hidden), jnp.float32),
        grid=(n_b, n_t),
        in_specs=[
            pl.BlockSpec((chunk_T, b_blk, in_size), lambda bi, ti: (ti, bi, 0)),
            pl.BlockSpec((in_size, four_h), lambda bi, ti: (0, 0)),
            pl.BlockSpec((hidden, four_h), lambda bi, ti: (0, 0)),
            pl.BlockSpec((1, four_h), lambda bi, ti: (0, 0)),
        ],
        out_specs=pl.BlockSpec((b_blk, hidden), lambda bi, ti: (bi, 0)),
        scratch_shapes=[
            pltpu.VMEM((chunk_T, b_blk, four_h), jnp.bfloat16),   # xp
            pltpu.VMEM((b_blk, hidden), jnp.float32),             # h carry
            pltpu.VMEM((b_blk, hidden), jnp.float32),             # c carry
        ],
        compiler_params=pltpu.CompilerParams(
            dimension_semantics=("parallel", "arbitrary"),
            vmem_limit_bytes=vmem_limit),
    )(x_tm, wih_t, whh_t, b)


def lstm_reference(x, w_ih, w_hh, b_ih, b_hh):
    """Pure-JAX f32 reference matching torch.nn.LSTMCell semantics."""
    B, T, _ = x.shape
    hidden = w_hh.shape[1]
    h = jnp.zeros((B, hidden), jnp.float32)
    c = jnp.zeros((B, hidden), jnp.float32)
    for t in range(T):
        xt = x[:, t, :]
        gates = xt @ w_ih.T + b_ih + h @ w_hh.T + b_hh
        i, f, g, o = jnp.split(gates, 4, axis=-1)
        i, f, o = jax.nn.sigmoid(i), jax.nn.sigmoid(f), jax.nn.sigmoid(o)
        g = jnp.tanh(g)
        c = f * c + i * g
        h = o * jnp.tanh(c)
    return h


if __name__ == "__main__":
    # Small shapes consistent with the module: in_size == out_size (see note).
    B, T, H = 8, 8, 128

    key = jax.random.PRNGKey(0)
    kx, k1, k2, k3, k4 = jax.random.split(key, 5)

    scale = 1.0 / jnp.sqrt(jnp.float32(H))
    x = jax.random.normal(kx, (B, T, H), jnp.float32)
    w_ih = jax.random.uniform(k1, (4 * H, H), jnp.float32, -scale, scale)
    w_hh = jax.random.uniform(k2, (4 * H, H), jnp.float32, -scale, scale)
    b_ih = jax.random.uniform(k3, (4 * H,), jnp.float32, -scale, scale)
    b_hh = jax.random.uniform(k4, (4 * H,), jnp.float32, -scale, scale)

    h_kernel = jax.block_until_ready(lstm_forward(x, w_ih, w_hh, b_ih, b_hh))
    h_ref = jax.block_until_ready(lstm_reference(x, w_ih, w_hh, b_ih, b_hh))

    assert h_kernel.shape == (B, H)
    err = float(jnp.max(jnp.abs(h_kernel - h_ref)))
    # bf16 matmul operands / bf16 x and xp (f32 accumulation and f32 gate math)
    # vs. the pure-f32 reference after 8 recurrent steps.
    assert err < 5e-2, err
    print("KERNEL_OK")
</pallas_src>

<mosaic_0001>
module attributes {stable_mosaic.version = 11 : i64} {
  func.func @_lstm_kernel(%arg0: i32, %arg1: i32, %arg2: memref<8x8x128xbf16, #tpu.memory_space<vmem>>, %arg3: memref<128x512xbf16, #tpu.memory_space<vmem>>, %arg4: memref<128x512xbf16, #tpu.memory_space<vmem>>, %arg5: memref<1x512xf32, #tpu.memory_space<vmem>>, %arg6: memref<8x128xf32, #tpu.memory_space<vmem>>, %arg7: memref<8x8x512xbf16, #tpu.memory_space<vmem>>, %arg8: memref<8x128xf32, #tpu.memory_space<vmem>>, %arg9: memref<8x128xf32, #tpu.memory_space<vmem>>) attributes {dimension_semantics = [#tpu.dimension_semantics<parallel>, #tpu.dimension_semantics<arbitrary>], iteration_bounds = array<i64: 1, 1>, scalar_prefetch = 0 : i64, scratch_operands = 3 : i64, tpu.core_type = #tpu.core_type<tc>, window_params = [{transform_indices = @transform_0, window_bounds = array<i64: 8, 8, 128>}, {pipeline_mode = #tpu.pipeline_mode<synchronous>, transform_indices = @transform_1, window_bounds = array<i64: 128, 512>}, {pipeline_mode = #tpu.pipeline_mode<synchronous>, transform_indices = @transform_2, window_bounds = array<i64: 128, 512>}, {pipeline_mode = #tpu.pipeline_mode<synchronous>, transform_indices = @transform_3, window_bounds = array<i64: 1, 512>}, {transform_indices = @transform_4, window_bounds = array<i64: 8, 128>}]} {
    %c0_i32 = arith.constant 0 : i32
    %0 = arith.cmpi eq, %arg1, %c0_i32 : i32
    %1 = arith.extui %0 : i1 to i32
    %c0_i32_0 = arith.constant 0 : i32
    %2 = arith.cmpi ne, %1, %c0_i32_0 : i32
    scf.if %2 {
      %cst_55 = arith.constant 0.000000e+00 : f32
      %219 = vector.broadcast %cst_55 : f32 to vector<8x128xf32>
      %c0_56 = arith.constant 0 : index
      %c0_57 = arith.constant 0 : index
      %220 = vector.load %arg8[%c0_56, %c0_57] : memref<8x128xf32, #tpu.memory_space<vmem>>, vector<8x128xf32>
      tpu.vector_store %arg8[%c0_56, %c0_57], %219 {strides = array<i32>} : memref<8x128xf32, #tpu.memory_space<vmem>>, vector<8x128xf32>,
      %cst_58 = arith.constant 0.000000e+00 : f32
      %221 = vector.broadcast %cst_58 : f32 to vector<8x128xf32>
      %c0_59 = arith.constant 0 : index
      %c0_60 = arith.constant 0 : index
      %222 = vector.load %arg9[%c0_59, %c0_60] : memref<8x128xf32, #tpu.memory_space<vmem>>, vector<8x128xf32>
      tpu.vector_store %arg9[%c0_59, %c0_60], %221 {strides = array<i32>} : memref<8x128xf32, #tpu.memory_space<vmem>>, vector<8x128xf32>,
    } else {
    }
    %c0 = arith.constant 0 : index
    %c0_1 = arith.constant 0 : index
    %c0_2 = arith.constant 0 : index
    %3 = vector.load %arg2[%c0, %c0_1, %c0_2] : memref<8x8x128xbf16, #tpu.memory_space<vmem>>, vector<8x8x128xbf16>
    %4 = vector.shape_cast %3 : vector<8x8x128xbf16> to vector<64x128xbf16>
    %c0_3 = arith.constant 0 : index
    %c0_4 = arith.constant 0 : index
    %5 = vector.load %arg3[%c0_3, %c0_4] : memref<128x512xbf16, #tpu.memory_space<vmem>>, vector<128x512xbf16>
    %cst = arith.constant dense<0.000000e+00> : vector<64x512xf32>
    %6 = tpu.matmul %4, %5, %cst {dimension_numbers = #tpu.dot_dimension_numbers<[1], [0], [0], [1], [0, 0, 1, 1], [], []>} : vector<64x128xbf16>, vector<128x512xbf16>, vector<64x512xf32> -> vector<64x512xf32>
    %7 = vector.shape_cast %6 : vector<64x512xf32> to vector<8x8x512xf32>
    %8 = arith.truncf %7 : vector<8x8x512xf32> to vector<8x8x512xbf16>
    %c0_5 = arith.constant 0 : index
    %c0_6 = arith.constant 0 : index
    %c0_7 = arith.constant 0 : index
    %9 = vector.load %arg7[%c0_5, %c0_6, %c0_7] : memref<8x8x512xbf16, #tpu.memory_space<vmem>>, vector<8x8x512xbf16>
    tpu.vector_store %arg7[%c0_5, %c0_6, %c0_7], %8 {strides = array<i32>} : memref<8x8x512xbf16, #tpu.memory_space<vmem>>, vector<8x8x512xbf16>,
    %c0_8 = arith.constant 0 : index
    %c0_9 = arith.constant 0 : index
    %10 = vector.load %arg4[%c0_8, %c0_9] : memref<128x512xbf16, #tpu.memory_space<vmem>>, vector<128x512xbf16>
    %c0_10 = arith.constant 0 : index
    %c0_11 = arith.constant 0 : index
    %11 = vector.load %arg5[%c0_10, %c0_11] : memref<1x512xf32, #tpu.memory_space<vmem>>, vector<1x512xf32>
    %c0_12 = arith.constant 0 : index
    %c0_13 = arith.constant 0 : index
    %12 = vector.load %arg8[%c0_12, %c0_13] : memref<8x128xf32, #tpu.memory_space<vmem>>, vector<8x128xf32>
    %c0_14 = arith.constant 0 : index
    %c0_15 = arith.constant 0 : index
    %13 = vector.load %arg9[%c0_14, %c0_15] : memref<8x128xf32, #tpu.memory_space<vmem>>, vector<8x128xf32>
    %c0_i32_16 = arith.constant 0 : i32
    %14 = arith.index_cast %c0_i32_16 : i32 to index
    %c0_17 = arith.constant 0 : index
    %c0_18 = arith.constant 0 : index
    %15 = vector.load %arg7[%14, %c0_17, %c0_18] : memref<8x8x512xbf16, #tpu.memory_space<vmem>>, vector<1x8x512xbf16>
    %16 = vector.shape_cast %15 : vector<1x8x512xbf16> to vector<8x512xbf16>
    %17 = arith.extf %16 : vector<8x512xbf16> to vector<8x512xf32>
    %18 = vector.broadcast %11 : vector<1x512xf32> to vector<8x512xf32>
    %19 = arith.addf %17, %18 : vector<8x512xf32>
    %20 = arith.truncf %12 : vector<8x128xf32> to vector<8x128xbf16>
    %cst_19 = arith.constant dense<0.000000e+00> : vector<8x512xf32>
    %21 = tpu.matmul %20, %10, %cst_19 {dimension_numbers = #tpu.dot_dimension_numbers<[1], [0], [0], [1], [0, 0, 1, 1], [], []>} : vector<8x128xbf16>, vector<128x512xbf16>, vector<8x512xf32> -> vector<8x512xf32>
    %22 = arith.addf %19, %21 : vector<8x512xf32>
    %23 = vector.extract_strided_slice %22 {offsets = [0, 0], sizes = [8, 384], strides = [1, 1]} : vector<8x512xf32> to vector<8x384xf32>
    %24 = arith.negf %23 : vector<8x384xf32>
    %25 = math.exp %24 : vector<8x384xf32>
    %cst_20 = arith.constant 1.000000e+00 : f32
    %26 = vector.broadcast %cst_20 : f32 to vector<8x384xf32>
    %27 = arith.addf %26, %25 : vector<8x384xf32>
    %28 = arith.divf %26, %27 : vector<8x384xf32>
    %29 = vector.extract_strided_slice %22 {offsets = [0, 384], sizes = [8, 128], strides = [1, 1]} : vector<8x512xf32> to vector<8x128xf32>
    %30 = math.tanh %29 : vector<8x128xf32>
    %31 = vector.extract_strided_slice %28 {offsets = [0, 0], sizes = [8, 128], strides = [1, 1]} : vector<8x384xf32> to vector<8x128xf32>
    %32 = vector.extract_strided_slice %28 {offsets = [0, 128], sizes = [8, 128], strides = [1, 1]} : vector<8x384xf32> to vector<8x128xf32>
    %33 = vector.extract_strided_slice %28 {offsets = [0, 256], sizes = [8, 128], strides = [1, 1]} : vector<8x384xf32> to vector<8x128xf32>
    %34 = arith.mulf %32, %13 : vector<8x128xf32>
    %35 = arith.mulf %31, %30 : vector<8x128xf32>
    %36 = arith.addf %34, %35 : vector<8x128xf32>
    %37 = math.tanh %36 : vector<8x128xf32>
    %38 = arith.mulf %33, %37 : vector<8x128xf32>
    %c1_i32 = arith.constant 1 : i32
    %39 = arith.index_cast %c1_i32 : i32 to index
    %c0_21 = arith.constant 0 : index
    %c0_22 = arith.constant 0 : index
    %40 = vector.load %arg7[%39, %c0_21, %c0_22] : memref<8x8x512xbf16, #tpu.memory_space<vmem>>, vector<1x8x512xbf16>
    %41 = vector.shape_cast %40 : vector<1x8x512xbf16> to vector<8x512xbf16>
    %42 = arith.extf %41 : vector<8x512xbf16> to vector<8x512xf32>
    %43 = vector.broadcast %11 : vector<1x512xf32> to vector<8x512xf32>
    %44 = arith.addf %42, %43 : vector<8x512xf32>
    %45 = arith.truncf %38 : vector<8x128xf32> to vector<8x128xbf16>
    %cst_23 = arith.constant dense<0.000000e+00> : vector<8x512xf32>
    %46 = tpu.matmul %45, %10, %cst_23 {dimension_numbers = #tpu.dot_dimension_numbers<[1], [0], [0], [1], [0, 0, 1, 1], [], []>} : vector<8x128xbf16>, vector<128x512xbf16>, vector<8x512xf32> -> vector<8x512xf32>
    %47 = arith.addf %44, %46 : vector<8x512xf32>
    %48 = vector.extract_strided_slice %47 {offsets = [0, 0], sizes = [8, 384], strides = [1, 1]} : vector<8x512xf32> to vector<8x384xf32>
    %49 = arith.negf %48 : vector<8x384xf32>
    %50 = math.exp %49 : vector<8x384xf32>
    %cst_24 = arith.constant 1.000000e+00 : f32
    %51 = vector.broadcast %cst_24 : f32 to vector<8x384xf32>
    %52 = arith.addf %51, %50 : vector<8x384xf32>
    %53 = arith.divf %51, %52 : vector<8x384xf32>
    %54 = vector.extract_strided_slice %47 {offsets = [0, 384], sizes = [8, 128], strides = [1, 1]} : vector<8x512xf32> to vector<8x128xf32>
    %55 = math.tanh %54 : vector<8x128xf32>
    %56 = vector.extract_strided_slice %53 {offsets = [0, 0], sizes = [8, 128], strides = [1, 1]} : vector<8x384xf32> to vector<8x128xf32>
    %57 = vector.extract_strided_slice %53 {offsets = [0, 128], sizes = [8, 128], strides = [1, 1]} : vector<8x384xf32> to vector<8x128xf32>
    %58 = vector.extract_strided_slice %53 {offsets = [0, 256], sizes = [8, 128], strides = [1, 1]} : vector<8x384xf32> to vector<8x128xf32>
    %59 = arith.mulf %57, %36 : vector<8x128xf32>
    %60 = arith.mulf %56, %55 : vector<8x128xf32>
    %61 = arith.addf %59, %60 : vector<8x128xf32>
    %62 = math.tanh %61 : vector<8x128xf32>
    %63 = arith.mulf %58, %62 : vector<8x128xf32>
    %c2_i32 = arith.constant 2 : i32
    %64 = arith.index_cast %c2_i32 : i32 to index
    %c0_25 = arith.constant 0 : index
    %c0_26 = arith.constant 0 : index
    %65 = vector.load %arg7[%64, %c0_25, %c0_26] : memref<8x8x512xbf16, #tpu.memory_space<vmem>>, vector<1x8x512xbf16>
    %66 = vector.shape_cast %65 : vector<1x8x512xbf16> to vector<8x512xbf16>
    %67 = arith.extf %66 : vector<8x512xbf16> to vector<8x512xf32>
    %68 = vector.broadcast %11 : vector<1x512xf32> to vector<8x512xf32>
    %69 = arith.addf %67, %68 : vector<8x512xf32>
    %70 = arith.truncf %63 : vector<8x128xf32> to vector<8x128xbf16>
    %cst_27 = arith.constant dense<0.000000e+00> : vector<8x512xf32>
    %71 = tpu.matmul %70, %10, %cst_27 {dimension_numbers = #tpu.dot_dimension_numbers<[1], [0], [0], [1], [0, 0, 1, 1], [], []>} : vector<8x128xbf16>, vector<128x512xbf16>, vector<8x512xf32> -> vector<8x512xf32>
    %72 = arith.addf %69, %71 : vector<8x512xf32>
    %73 = vector.extract_strided_slice %72 {offsets = [0, 0], sizes = [8, 384], strides = [1, 1]} : vector<8x512xf32> to vector<8x384xf32>
    %74 = arith.negf %73 : vector<8x384xf32>
    %75 = math.exp %74 : vector<8x384xf32>
    %cst_28 = arith.constant 1.000000e+00 : f32
    %76 = vector.broadcast %cst_28 : f32 to vector<8x384xf32>
    %77 = arith.addf %76, %75 : vector<8x384xf32>
    %78 = arith.divf %76, %77 : vector<8x384xf32>
    %79 = vector.extract_strided_slice %72 {offsets = [0, 384], sizes = [8, 128], strides = [1, 1]} : vector<8x512xf32> to vector<8x128xf32>
    %80 = math.tanh %79 : vector<8x128xf32>
    %81 = vector.extract_strided_slice %78 {offsets = [0, 0], sizes = [8, 128], strides = [1, 1]} : vector<8x384xf32> to vector<8x128xf32>
    %82 = vector.extract_strided_slice %78 {offsets = [0, 128], sizes = [8, 128], strides = [1, 1]} : vector<8x384xf32> to vector<8x128xf32>
    %83 = vector.extract_strided_slice %78 {offsets = [0, 256], sizes = [8, 128], strides = [1, 1]} : vector<8x384xf32> to vector<8x128xf32>
    %84 = arith.mulf %82, %61 : vector<8x128xf32>
    %85 = arith.mulf %81, %80 : vector<8x128xf32>
    %86 = arith.addf %84, %85 : vector<8x128xf32>
    %87 = math.tanh %86 : vector<8x128xf32>
    %88 = arith.mulf %83, %87 : vector<8x128xf32>
    %c3_i32 = arith.constant 3 : i32
    %89 = arith.index_cast %c3_i32 : i32 to index
    %c0_29 = arith.constant 0 : index
    %c0_30 = arith.constant 0 : index
    %90 = vector.load %arg7[%89, %c0_29, %c0_30] : memref<8x8x512xbf16, #tpu.memory_space<vmem>>, vector<1x8x512xbf16>
    %91 = vector.shape_cast %90 : vector<1x8x512xbf16> to vector<8x512xbf16>
    %92 = arith.extf %91 : vector<8x512xbf16> to vector<8x512xf32>
    %93 = vector.broadcast %11 : vector<1x512xf32> to vector<8x512xf32>
    %94 = arith.addf %92, %93 : vector<8x512xf32>
    %95 = arith.truncf %88 : vector<8x128xf32> to vector<8x128xbf16>
    %cst_31 = arith.constant dense<0.000000e+00> : vector<8x512xf32>
    %96 = tpu.matmul %95, %10, %cst_31 {dimension_numbers = #tpu.dot_dimension_numbers<[1], [0], [0], [1], [0, 0, 1, 1], [], []>} : vector<8x128xbf16>, vector<128x512xbf16>, vector<8x512xf32> -> vector<8x512xf32>
    %97 = arith.addf %94, %96 : vector<8x512xf32>
    %98 = vector.extract_strided_slice %97 {offsets = [0, 0], sizes = [8, 384], strides = [1, 1]} : vector<8x512xf32> to vector<8x384xf32>
    %99 = arith.negf %98 : vector<8x384xf32>
    %100 = math.exp %99 : vector<8x384xf32>
    %cst_32 = arith.constant 1.000000e+00 : f32
    %101 = vector.broadcast %cst_32 : f32 to vector<8x384xf32>
    %102 = arith.addf %101, %100 : vector<8x384xf32>
    %103 = arith.divf %101, %102 : vector<8x384xf32>
    %104 = vector.extract_strided_slice %97 {offsets = [0, 384], sizes = [8, 128], strides = [1, 1]} : vector<8x512xf32> to vector<8x128xf32>
    %105 = math.tanh %104 : vector<8x128xf32>
    %106 = vector.extract_strided_slice %103 {offsets = [0, 0], sizes = [8, 128], strides = [1, 1]} : vector<8x384xf32> to vector<8x128xf32>
    %107 = vector.extract_strided_slice %103 {offsets = [0, 128], sizes = [8, 128], strides = [1, 1]} : vector<8x384xf32> to vector<8x128xf32>
    %108 = vector.extract_strided_slice %103 {offsets = [0, 256], sizes = [8, 128], strides = [1, 1]} : vector<8x384xf32> to vector<8x128xf32>
    %109 = arith.mulf %107, %86 : vector<8x128xf32>
    %110 = arith.mulf %106, %105 : vector<8x128xf32>
    %111 = arith.addf %109, %110 : vector<8x128xf32>
    %112 = math.tanh %111 : vector<8x128xf32>
    %113 = arith.mulf %108, %112 : vector<8x128xf32>
    %c4_i32 = arith.constant 4 : i32
    %114 = arith.index_cast %c4_i32 : i32 to index
    %c0_33 = arith.constant 0 : index
    %c0_34 = arith.constant 0 : index
    %115 = vector.load %arg7[%114, %c0_33, %c0_34] : memref<8x8x512xbf16, #tpu.memory_space<vmem>>, vector<1x8x512xbf16>
    %116 = vector.shape_cast %115 : vector<1x8x512xbf16> to vector<8x512xbf16>
    %117 = arith.extf %116 : vector<8x512xbf16> to vector<8x512xf32>
    %118 = vector.broadcast %11 : vector<1x512xf32> to vector<8x512xf32>
    %119 = arith.addf %117, %118 : vector<8x512xf32>
    %120 = arith.truncf %113 : vector<8x128xf32> to vector<8x128xbf16>
    %cst_35 = arith.constant dense<0.000000e+00> : vector<8x512xf32>
    %121 = tpu.matmul %120, %10, %cst_35 {dimension_numbers = #tpu.dot_dimension_numbers<[1], [0], [0], [1], [0, 0, 1, 1], [], []>} : vector<8x128xbf16>, vector<128x512xbf16>, vector<8x512xf32> -> vector<8x512xf32>
    %122 = arith.addf %119, %121 : vector<8x512xf32>
    %123 = vector.extract_strided_slice %122 {offsets = [0, 0], sizes = [8, 384], strides = [1, 1]} : vector<8x512xf32> to vector<8x384xf32>
    %124 = arith.negf %123 : vector<8x384xf32>
    %125 = math.exp %124 : vector<8x384xf32>
    %cst_36 = arith.constant 1.000000e+00 : f32
    %126 = vector.broadcast %cst_36 : f32 to vector<8x384xf32>
    %127 = arith.addf %126, %125 : vector<8x384xf32>
    %128 = arith.divf %126, %127 : vector<8x384xf32>
    %129 = vector.extract_strided_slice %122 {offsets = [0, 384], sizes = [8, 128], strides = [1, 1]} : vector<8x512xf32> to vector<8x128xf32>
    %130 = math.tanh %129 : vector<8x128xf32>
    %131 = vector.extract_strided_slice %128 {offsets = [0, 0], sizes = [8, 128], strides = [1, 1]} : vector<8x384xf32> to vector<8x128xf32>
    %132 = vector.extract_strided_slice %128 {offsets = [0, 128], sizes = [8, 128], strides = [1, 1]} : vector<8x384xf32> to vector<8x128xf32>
    %133 = vector.extract_strided_slice %128 {offsets = [0, 256], sizes = [8, 128], strides = [1, 1]} : vector<8x384xf32> to vector<8x128xf32>
    %134 = arith.mulf %132, %111 : vector<8x128xf32>
    %135 = arith.mulf %131, %130 : vector<8x128xf32>
    %136 = arith.addf %134, %135 : vector<8x128xf32>
    %137 = math.tanh %136 : vector<8x128xf32>
    %138 = arith.mulf %133, %137 : vector<8x128xf32>
    %c5_i32 = arith.constant 5 : i32
    %139 = arith.index_cast %c5_i32 : i32 to index
    %c0_37 = arith.constant 0 : index
    %c0_38 = arith.constant 0 : index
    %140 = vector.load %arg7[%139, %c0_37, %c0_38] : memref<8x8x512xbf16, #tpu.memory_space<vmem>>, vector<1x8x512xbf16>
    %141 = vector.shape_cast %140 : vector<1x8x512xbf16> to vector<8x512xbf16>
    %142 = arith.extf %141 : vector<8x512xbf16> to vector<8x512xf32>
    %143 = vector.broadcast %11 : vector<1x512xf32> to vector<8x512xf32>
    %144 = arith.addf %142, %143 : vector<8x512xf32>
    %145 = arith.truncf %138 : vector<8x128xf32> to vector<8x128xbf16>
    %cst_39 = arith.constant dense<0.000000e+00> : vector<8x512xf32>
    %146 = tpu.matmul %145, %10, %cst_39 {dimension_numbers = #tpu.dot_dimension_numbers<[1], [0], [0], [1], [0, 0, 1, 1], [], []>} : vector<8x128xbf16>, vector<128x512xbf16>, vector<8x512xf32> -> vector<8x512xf32>
    %147 = arith.addf %144, %146 : vector<8x512xf32>
    %148 = vector.extract_strided_slice %147 {offsets = [0, 0], sizes = [8, 384], strides = [1, 1]} : vector<8x512xf32> to vector<8x384xf32>
    %149 = arith.negf %148 : vector<8x384xf32>
    %150 = math.exp %149 : vector<8x384xf32>
    %cst_40 = arith.constant 1.000000e+00 : f32
    %151 = vector.broadcast %cst_40 : f32 to vector<8x384xf32>
    %152 = arith.addf %151, %150 : vector<8x384xf32>
    %153 = arith.divf %151, %152 : vector<8x384xf32>
    %154 = vector.extract_strided_slice %147 {offsets = [0, 384], sizes = [8, 128], strides = [1, 1]} : vector<8x512xf32> to vector<8x128xf32>
    %155 = math.tanh %154 : vector<8x128xf32>
    %156 = vector.extract_strided_slice %153 {offsets = [0, 0], sizes = [8, 128], strides = [1, 1]} : vector<8x384xf32> to vector<8x128xf32>
    %157 = vector.extract_strided_slice %153 {offsets = [0, 128], sizes = [8, 128], strides = [1, 1]} : vector<8x384xf32> to vector<8x128xf32>
    %158 = vector.extract_strided_slice %153 {offsets = [0, 256], sizes = [8, 128], strides = [1, 1]} : vector<8x384xf32> to vector<8x128xf32>
    %159 = arith.mulf %157, %136 : vector<8x128xf32>
    %160 = arith.mulf %156, %155 : vector<8x128xf32>
    %161 = arith.addf %159, %160 : vector<8x128xf32>
    %162 = math.tanh %161 : vector<8x128xf32>
    %163 = arith.mulf %158, %162 : vector<8x128xf32>
    %c6_i32 = arith.constant 6 : i32
    %164 = arith.index_cast %c6_i32 : i32 to index
    %c0_41 = arith.constant 0 : index
    %c0_42 = arith.constant 0 : index
    %165 = vector.load %arg7[%164, %c0_41, %c0_42] : memref<8x8x512xbf16, #tpu.memory_space<vmem>>, vector<1x8x512xbf16>
    %166 = vector.shape_cast %165 : vector<1x8x512xbf16> to vector<8x512xbf16>
    %167 = arith.extf %166 : vector<8x512xbf16> to vector<8x512xf32>
    %168 = vector.broadcast %11 : vector<1x512xf32> to vector<8x512xf32>
    %169 = arith.addf %167, %168 : vector<8x512xf32>
    %170 = arith.truncf %163 : vector<8x128xf32> to vector<8x128xbf16>
    %cst_43 = arith.constant dense<0.000000e+00> : vector<8x512xf32>
    %171 = tpu.matmul %170, %10, %cst_43 {dimension_numbers = #tpu.dot_dimension_numbers<[1], [0], [0], [1], [0, 0, 1, 1], [], []>} : vector<8x128xbf16>, vector<128x512xbf16>, vector<8x512xf32> -> vector<8x512xf32>
    %172 = arith.addf %169, %171 : vector<8x512xf32>
    %173 = vector.extract_strided_slice %172 {offsets = [0, 0], sizes = [8, 384], strides = [1, 1]} : vector<8x512xf32> to vector<8x384xf32>
    %174 = arith.negf %173 : vector<8x384xf32>
    %175 = math.exp %174 : vector<8x384xf32>
    %cst_44 = arith.constant 1.000000e+00 : f32
    %176 = vector.broadcast %cst_44 : f32 to vector<8x384xf32>
    %177 = arith.addf %176, %175 : vector<8x384xf32>
    %178 = arith.divf %176, %177 : vector<8x384xf32>
    %179 = vector.extract_strided_slice %172 {offsets = [0, 384], sizes = [8, 128], strides = [1, 1]} : vector<8x512xf32> to vector<8x128xf32>
    %180 = math.tanh %179 : vector<8x128xf32>
    %181 = vector.extract_strided_slice %178 {offsets = [0, 0], sizes = [8, 128], strides = [1, 1]} : vector<8x384xf32> to vector<8x128xf32>
    %182 = vector.extract_strided_slice %178 {offsets = [0, 128], sizes = [8, 128], strides = [1, 1]} : vector<8x384xf32> to vector<8x128xf32>
    %183 = vector.extract_strided_slice %178 {offsets = [0, 256], sizes = [8, 128], strides = [1, 1]} : vector<8x384xf32> to vector<8x128xf32>
    %184 = arith.mulf %182, %161 : vector<8x128xf32>
    %185 = arith.mulf %181, %180 : vector<8x128xf32>
    %186 = arith.addf %184, %185 : vector<8x128xf32>
    %187 = math.tanh %186 : vector<8x128xf32>
    %188 = arith.mulf %183, %187 : vector<8x128xf32>
    %c7_i32 = arith.constant 7 : i32
    %189 = arith.index_cast %c7_i32 : i32 to index
    %c0_45 = arith.constant 0 : index
    %c0_46 = arith.constant 0 : index
    %190 = vector.load %arg7[%189, %c0_45, %c0_46] : memref<8x8x512xbf16, #tpu.memory_space<vmem>>, vector<1x8x512xbf16>
    %191 = vector.shape_cast %190 : vector<1x8x512xbf16> to vector<8x512xbf16>
    %192 = arith.extf %191 : vector<8x512xbf16> to vector<8x512xf32>
    %193 = vector.broadcast %11 : vector<1x512xf32> to vector<8x512xf32>
    %194 = arith.addf %192, %193 : vector<8x512xf32>
    %195 = arith.truncf %188 : vector<8x128xf32> to vector<8x128xbf16>
    %cst_47 = arith.constant dense<0.000000e+00> : vector<8x512xf32>
    %196 = tpu.matmul %195, %10, %cst_47 {dimension_numbers = #tpu.dot_dimension_numbers<[1], [0], [0], [1], [0, 0, 1, 1], [], []>} : vector<8x128xbf16>, vector<128x512xbf16>, vector<8x512xf32> -> vector<8x512xf32>
    %197 = arith.addf %194, %196 : vector<8x512xf32>
    %198 = vector.extract_strided_slice %197 {offsets = [0, 0], sizes = [8, 384], strides = [1, 1]} : vector<8x512xf32> to vector<8x384xf32>
    %199 = arith.negf %198 : vector<8x384xf32>
    %200 = math.exp %199 : vector<8x384xf32>
    %cst_48 = arith.constant 1.000000e+00 : f32
    %201 = vector.broadcast %cst_48 : f32 to vector<8x384xf32>
    %202 = arith.addf %201, %200 : vector<8x384xf32>
    %203 = arith.divf %201, %202 : vector<8x384xf32>
    %204 = vector.extract_strided_slice %197 {offsets = [0, 384], sizes = [8, 128], strides = [1, 1]} : vector<8x512xf32> to vector<8x128xf32>
    %205 = math.tanh %204 : vector<8x128xf32>
    %206 = vector.extract_strided_slice %203 {offsets = [0, 0], sizes = [8, 128], strides = [1, 1]} : vector<8x384xf32> to vector<8x128xf32>
    %207 = vector.extract_strided_slice %203 {offsets = [0, 128], sizes = [8, 128], strides = [1, 1]} : vector<8x384xf32> to vector<8x128xf32>
    %208 = vector.extract_strided_slice %203 {offsets = [0, 256], sizes = [8, 128], strides = [1, 1]} : vector<8x384xf32> to vector<8x128xf32>
    %209 = arith.mulf %207, %186 : vector<8x128xf32>
    %210 = arith.mulf %206, %205 : vector<8x128xf32>
    %211 = arith.addf %209, %210 : vector<8x128xf32>
    %212 = math.tanh %211 : vector<8x128xf32>
    %213 = arith.mulf %208, %212 : vector<8x128xf32>
    %c8_i32 = arith.constant 8 : i32
    %c0_49 = arith.constant 0 : index
    %c0_50 = arith.constant 0 : index
    %214 = vector.load %arg8[%c0_49, %c0_50] : memref<8x128xf32, #tpu.memory_space<vmem>>, vector<8x128xf32>
    tpu.vector_store %arg8[%c0_49, %c0_50], %213 {strides = array<i32>} : memref<8x128xf32, #tpu.memory_space<vmem>>, vector<8x128xf32>,
    %c0_51 = arith.constant 0 : index
    %c0_52 = arith.constant 0 : index
    %215 = vector.load %arg9[%c0_51, %c0_52] : memref<8x128xf32, #tpu.memory_space<vmem>>, vector<8x128xf32>
    tpu.vector_store %arg9[%c0_51, %c0_52], %211 {strides = array<i32>} : memref<8x128xf32, #tpu.memory_space<vmem>>, vector<8x128xf32>,
    %c0_i32_53 = arith.constant 0 : i32
    %216 = arith.cmpi eq, %arg1, %c0_i32_53 : i32
    %217 = arith.extui %216 : i1 to i32
    %c0_i32_54 = arith.constant 0 : i32
    %218 = arith.cmpi ne, %217, %c0_i32_54 : i32
    scf.if %218 {
      %c0_55 = arith.constant 0 : index
      %c0_56 = arith.constant 0 : index
      %219 = vector.load %arg6[%c0_55, %c0_56] : memref<8x128xf32, #tpu.memory_space<vmem>>, vector<8x128xf32>
      tpu.vector_store %arg6[%c0_55, %c0_56], %213 {strides = array<i32>} : memref<8x128xf32, #tpu.memory_space<vmem>>, vector<8x128xf32>,
    } else {
    }
    return
  }
  func.func @transform_0(%arg0: i32, %arg1: i32) -> (i32, i32, i32) {
    %c0_i32 = arith.constant 0 : i32
    %c0_i32_0 = arith.constant 0 : i32
    return %arg1, %arg0, %c0_i32 : i32, i32, i32
  }
  func.func @transform_1(%arg0: i32, %arg1: i32) -> (i32, i32) {
    %c0_i32 = arith.constant 0 : i32
    %c0_i32_0 = arith.constant 0 : i32
    %c0_i32_1 = arith.constant 0 : i32
    return %c0_i32, %c0_i32_0 : i32, i32
  }
  func.func @transform_2(%arg0: i32, %arg1: i32) -> (i32, i32) {
    %c0_i32 = arith.constant 0 : i32
    %c0_i32_0 = arith.constant 0 : i32
    %c0_i32_1 = arith.constant 0 : i32
    return %c0_i32, %c0_i32_0 : i32, i32
  }
  func.func @transform_3(%arg0: i32, %arg1: i32) -> (i32, i32) {
    %c0_i32 = arith.constant 0 : i32
    %c0_i32_0 = arith.constant 0 : i32
    %c0_i32_1 = arith.constant 0 : i32
    return %c0_i32, %c0_i32_0 : i32, i32
  }
  func.func @transform_4(%arg0: i32, %arg1: i32) -> (i32, i32) {
    %c0_i32 = arith.constant 0 : i32
    %c0_i32_0 = arith.constant 0 : i32
    return %arg0, %c0_i32 : i32, i32
  }
}

</mosaic_0001>

<llo_original>
// kernel: tpu_custom_call.1
$region0: #{tpu_custom_call.1}
  #allocation0 [shape = 'u32[]', space=smem, size = 0x4, offset = 0x4, fixed_abs, tag = 'smem constant byte address 0x4 - core index']
  #allocation1 [shape = 'u32[144,128]{1,0:T(1,128)}', space=vmem, size = 0x12000, scoped, tag = 'internal scratch']
  #allocation2 [shape = 'bf16[8,8,512]{2,1,0:T(8,128)(2,1)}', space=vmem, size = 0x10000, scoped, tag = 'scratch operand']
  #allocation3 [shape = 'f32[8,128]{1,0:T(8,128)}', space=vmem, size = 0x1000, scoped, tag = 'scratch operand']
  #allocation4 [shape = 'f32[8,128]{1,0:T(8,128)}', space=vmem, size = 0x1000, scoped, tag = 'scratch operand']
  %s0 = inlined_call_operand.hbm [shape: bf16[8,8,128], index: 0, kind: input, shape index: {}]
  %s1 = inlined_call_operand.hbm [shape: bf16[128,512], index: 1, kind: input, shape index: {}]
  %s2 = inlined_call_operand.hbm [shape: bf16[128,512], index: 2, kind: input, shape index: {}]
  %s3 = inlined_call_operand.vmem [shape: f32[1,512], index: 3, kind: input, shape index: {}]
  %s4 = inlined_call_operand.hbm [shape: f32[8,128], index: 4, kind: output, shape index: {}]
  %s5 = sld [smem:[#allocation0]]
  $region46: #{tpu_custom_call.1} parent=0
    _
  %s7 = ssub.s32 1, %s5
  %s8 = scalar_select 0, %s7, %s5
  $region1: #{tpu_custom_call.1} parent=0
    #allocation5 [shape = 'u8[16384]{0}', space=vmem, size = 0x4000, scoped, tag = 'input window, operand 0, single buffered']
    #allocation6 [shape = 's32[1]{0}', space=sflag, size = 0x4, scoped, tag = 'scoped memory for tpu_custom_call.1']
    #allocation7 [shape = 's32[1]{0}', space=sflag, size = 0x4, scoped, tag = 'scoped memory for tpu_custom_call.1']
    #allocation8 [shape = 'u8[131072]{0}', space=vmem, size = 0x20000, scoped, tag = 'input window, operand 1, single buffered']
    #allocation9 [shape = 's32[1]{0}', space=sflag, size = 0x4, scoped, tag = 'scoped memory for tpu_custom_call.1']
    #allocation10 [shape = 'u8[131072]{0}', space=vmem, size = 0x20000, scoped, tag = 'input window, operand 2, single buffered']
    #allocation11 [shape = 'u8[4096]{0}', space=vmem, size = 0x1000, scoped, tag = 'output window, operand 0, single buffered']
    %9 = vsyncpa [#allocation6], 0
    %10 = vsyncpa [#allocation9], 0
    %11 = vsyncpa [#allocation7], 0
    // Predicated region
    $region2: #{tpu_custom_call.1} parent=1 // pred_check
      _
    $region3: #{tpu_custom_call.1} parent=1 // pred_check_branch
      %13 = sbr.rel (0) target = $region5
    $region4: #{tpu_custom_call.1} parent=1 // pred_region
      %s15 = ssub.s32 512, 512
      %16 = vsyncadd [#allocation6], %s15
      %s17 = sshll.u32 [#allocation5], 4
      %s18 = int_to_ptr.vmem [resolvable:$true] %s17
      %23 = dma.hbm_to_vmem [thread:$0]  %s0, 512, %s18, [#allocation6], 64, 64, 4
    $region5: #{tpu_custom_call.1} parent=1 // pred_fallthru
      _
    // Predicated region
    $region6: #{tpu_custom_call.1} parent=1 // pred_check
      _
    $region7: #{tpu_custom_call.1} parent=1 // pred_check_branch
      %25 = sbr.rel (0) target = $region9
    $region8: #{tpu_custom_call.1} parent=1 // pred_region
      %s27 = ssub.s32 4096, 4096
      %28 = vsyncadd [#allocation9], %s27
      %s29 = sshll.u32 [#allocation8], 4
      %s30 = int_to_ptr.vmem [resolvable:$true] %s29
      %35 = dma.hbm_to_vmem [thread:$0]  %s1, 4096, %s30, [#allocation9], 256, 256, 16
    $region9: #{tpu_custom_call.1} parent=1 // pred_fallthru
      _
    // Predicated region
    $region10: #{tpu_custom_call.1} parent=1 // pred_check
      _
    $region11: #{tpu_custom_call.1} parent=1 // pred_check_branch
      %37 = sbr.rel (0) target = $region13
    $region12: #{tpu_custom_call.1} parent=1 // pred_region
      %s39 = ssub.s32 4096, 4096
      %40 = vsyncadd [#allocation9], %s39
      %s41 = sshll.u32 [#allocation10], 4
      %s42 = int_to_ptr.vmem [resolvable:$true] %s41
      %47 = dma.hbm_to_vmem [thread:$0]  %s2, 4096, %s42, [#allocation9], 256, 256, 16
    $region13: #{tpu_custom_call.1} parent=1 // pred_fallthru
      _
    // Predicated region
    $region14: #{tpu_custom_call.1} parent=1 // pred_check
      _
    $region15: #{tpu_custom_call.1} parent=1 // pred_check_branch
      %49 = sbr.rel (0) target = $region17
    $region16: #{tpu_custom_call.1} parent=1 // pred_region
      _
    $region17: #{tpu_custom_call.1} parent=1 // pred_fallthru
      _
    // Predicated region
    $region18: #{tpu_custom_call.1} parent=1 // pred_check
      _
    $region19: #{tpu_custom_call.1} parent=1 // pred_check_branch
      %51 = sbr.rel (0) target = $region21
    $region20: #{tpu_custom_call.1} parent=1 // pred_region
      %52 = dma.done [#allocation6], 512
    $region21: #{tpu_custom_call.1} parent=1 // pred_fallthru
      _
    // Predicated region
    $region22: #{tpu_custom_call.1} parent=1 // pred_check
      _
    $region23: #{tpu_custom_call.1} parent=1 // pred_check_branch
      %54 = sbr.rel (0) target = $region25
    $region24: #{tpu_custom_call.1} parent=1 // pred_region
      %55 = dma.done [#allocation9], 4096
    $region25: #{tpu_custom_call.1} parent=1 // pred_fallthru
      _
    // Predicated region
    $region26: #{tpu_custom_call.1} parent=1 // pred_check
      _
    $region27: #{tpu_custom_call.1} parent=1 // pred_check_branch
      %57 = sbr.rel (0) target = $region29
    $region28: #{tpu_custom_call.1} parent=1 // pred_region
      %58 = dma.done [#allocation9], 4096
    $region29: #{tpu_custom_call.1} parent=1 // pred_fallthru
      _
    %p60 = scmp.eq.s32.totalorder 0, 0
    // Predicated region
    $region30: #{tpu_custom_call.1} parent=1 // pred_check
      %p61 = pneg %p60
    $region31: #{tpu_custom_call.1} parent=1 // pred_check_branch
      %63 = sbr.rel (%p61) target = $region33
    $region32: #{tpu_custom_call.1} parent=1 // pred_region
      %64 = vst [vmem:[#allocation3] sm:$0xff] 0.0
      %65 = vst [vmem:[#allocation4] sm:$0xff] 0.0
    $region33: #{tpu_custom_call.1} parent=1 // pred_fallthru
      _
    %v66 = vld [vmem:[#allocation5] sm:$0xf]
    %v67 = vld [vmem:[#allocation5 + $0x4] sm:$0xf]
    %v68 = vld [vmem:[#allocation5 + $0x8] sm:$0xf]
    %v69 = vld [vmem:[#allocation5 + $0xc] sm:$0xf]
    %v70 = vld [vmem:[#allocation5 + $0x10] sm:$0xf]
    %v71 = vld [vmem:[#allocation5 + $0x14] sm:$0xf]
    %v72 = vld [vmem:[#allocation5 + $0x18] sm:$0xf]
    %v73 = vld [vmem:[#allocation5 + $0x1c] sm:$0xf]
    %v74 = vld [vmem:[#allocation8] sm:$0xff]
    %v75 = vld [vmem:[#allocation8 + $0x8] sm:$0xff]
    %v76 = vld [vmem:[#allocation8 + $0x10] sm:$0xff]
    %v77 = vld [vmem:[#allocation8 + $0x18] sm:$0xff]
    %v78 = vld [vmem:[#allocation8 + $0x20] sm:$0xff]
    %v79 = vld [vmem:[#allocation8 + $0x28] sm:$0xff]
    %v80 = vld [vmem:[#allocation8 + $0x30] sm:$0xff]
    %v81 = vld [vmem:[#allocation8 + $0x38] sm:$0xff]
    %v82 = vld [vmem:[#allocation8 + $0x40] sm:$0xff]
    %v83 = vld [vmem:[#allocation8 + $0x48] sm:$0xff]
    %v84 = vld [vmem:[#allocation8 + $0x50] sm:$0xff]
    %v85 = vld [vmem:[#allocation8 + $0x58] sm:$0xff]
    %v86 = vld [vmem:[#allocation8 + $0x60] sm:$0xff]
    %v87 = vld [vmem:[#allocation8 + $0x68] sm:$0xff]
    %v88 = vld [vmem:[#allocation8 + $0x70] sm:$0xff]
    %v89 = vld [vmem:[#allocation8 + $0x78] sm:$0xff]
    %v90 = vld [vmem:[#allocation8 + $0x80] sm:$0xff]
    %v91 = vld [vmem:[#allocation8 + $0x88] sm:$0xff]
    %v92 = vld [vmem:[#allocation8 + $0x90] sm:$0xff]
    %v93 = vld [vmem:[#allocation8 + $0x98] sm:$0xff]
    %v94 = vld [vmem:[#allocation8 + $0xa0] sm:$0xff]
    %v95 = vld [vmem:[#allocation8 + $0xa8] sm:$0xff]
    %v96 = vld [vmem:[#allocation8 + $0xb0] sm:$0xff]
    %v97 = vld [vmem:[#allocation8 + $0xb8] sm:$0xff]
    %v98 = vld [vmem:[#allocation8 + $0xc0] sm:$0xff]
    %v99 = vld [vmem:[#allocation8 + $0xc8] sm:$0xff]
    %v100 = vld [vmem:[#allocation8 + $0xd0] sm:$0xff]
    %v101 = vld [vmem:[#allocation8 + $0xd8] sm:$0xff]
    %v102 = vld [vmem:[#allocation8 + $0xe0] sm:$0xff]
    %v103 = vld [vmem:[#allocation8 + $0xe8] sm:$0xff]
    %v104 = vld [vmem:[#allocation8 + $0xf0] sm:$0xff]
    %v105 = vld [vmem:[#allocation8 + $0xf8] sm:$0xff]
    %v114 = vunpack.c.l.b16 %v66
    %v115 = vunpack.c.l.b16 %v67
    %v116 = vunpack.c.l.b16 %v68
    %v117 = vunpack.c.l.b16 %v69
    %v118 = vunpack.c.l.b16 %v70
    %v119 = vunpack.c.l.b16 %v71
    %v120 = vunpack.c.l.b16 %v72
    %v121 = vunpack.c.l.b16 %v73
    %v122 = vpack.c.b16 %v115, %v114
    %v123 = vpack.c.b16 %v117, %v116
    %v124 = vpack.c.b16 %v119, %v118
    %v125 = vpack.c.b16 %v121, %v120
    %v162 = vunpack.c.l.b16 %v74
    %v163 = vunpack.c.h.b16 %v74
    %v164 = vunpack.c.l.b16 %v75
    %v165 = vunpack.c.h.b16 %v75
    %v166 = vunpack.c.l.b16 %v76
    %v167 = vunpack.c.h.b16 %v76
    %v168 = vunpack.c.l.b16 %v77
    %v169 = vunpack.c.h.b16 %v77
    %v170 = vunpack.c.l.b16 %v78
    %v171 = vunpack.c.h.b16 %v78
    %v172 = vunpack.c.l.b16 %v79
    %v173 = vunpack.c.h.b16 %v79
    %v174 = vunpack.c.l.b16 %v80
    %v175 = vunpack.c.h.b16 %v80
    %v176 = vunpack.c.l.b16 %v81
    %v177 = vunpack.c.h.b16 %v81
    %v178 = vunpack.c.l.b16 %v82
    %v179 = vunpack.c.h.b16 %v82
    %v180 = vunpack.c.l.b16 %v83
    %v181 = vunpack.c.h.b16 %v83
    %v182 = vunpack.c.l.b16 %v84
    %v183 = vunpack.c.h.b16 %v84
    %v184 = vunpack.c.l.b16 %v85
    %v185 = vunpack.c.h.b16 %v85
    %v186 = vunpack.c.l.b16 %v86
    %v187 = vunpack.c.h.b16 %v86
    %v188 = vunpack.c.l.b16 %v87
    %v189 = vunpack.c.h.b16 %v87
    %v190 = vunpack.c.l.b16 %v88
    %v191 = vunpack.c.h.b16 %v88
    %v192 = vunpack.c.l.b16 %v89
    %v193 = vunpack.c.h.b16 %v89
    %v194 = vunpack.c.l.b16 %v90
    %v195 = vunpack.c.h.b16 %v90
    %v196 = vunpack.c.l.b16 %v91
    %v197 = vunpack.c.h.b16 %v91
    %v198 = vunpack.c.l.b16 %v92
    %v199 = vunpack.c.h.b16 %v92
    %v200 = vunpack.c.l.b16 %v93
    %v201 = vunpack.c.h.b16 %v93
    %v202 = vunpack.c.l.b16 %v94
    %v203 = vunpack.c.h.b16 %v94
    %v204 = vunpack.c.l.b16 %v95
    %v205 = vunpack.c.h.b16 %v95
    %v206 = vunpack.c.l.b16 %v96
    %v207 = vunpack.c.h.b16 %v96
    %v208 = vunpack.c.l.b16 %v97
    %v209 = vunpack.c.h.b16 %v97
    %v210 = vunpack.c.l.b16 %v98
    %v211 = vunpack.c.h.b16 %v98
    %v212 = vunpack.c.l.b16 %v99
    %v213 = vunpack.c.h.b16 %v99
    %v214 = vunpack.c.l.b16 %v100
    %v215 = vunpack.c.h.b16 %v100
    %v216 = vunpack.c.l.b16 %v101
    %v217 = vunpack.c.h.b16 %v101
    %v218 = vunpack.c.l.b16 %v102
    %v219 = vunpack.c.h.b16 %v102
    %v220 = vunpack.c.l.b16 %v103
    %v221 = vunpack.c.h.b16 %v103
    %v222 = vunpack.c.l.b16 %v104
    %v223 = vunpack.c.h.b16 %v104
    %v224 = vunpack.c.l.b16 %v105
    %v225 = vunpack.c.h.b16 %v105
    %v226 = vpack.c.b16 %v166, %v162
    %v227 = vpack.c.b16 %v167, %v163
    %v228 = vpack.c.b16 %v168, %v164
    %v229 = vpack.c.b16 %v169, %v165
    %v230 = vpack.c.b16 %v174, %v170
    %v231 = vpack.c.b16 %v175, %v171
    %v232 = vpack.c.b16 %v176, %v172
    %v233 = vpack.c.b16 %v177, %v173
    %v234 = vpack.c.b16 %v182, %v178
    %v235 = vpack.c.b16 %v183, %v179
    %v236 = vpack.c.b16 %v184, %v180
    %v237 = vpack.c.b16 %v185, %v181
    %v238 = vpack.c.b16 %v190, %v186
    %v239 = vpack.c.b16 %v191, %v187
    %v240 = vpack.c.b16 %v192, %v188
    %v241 = vpack.c.b16 %v193, %v189
    %v242 = vpack.c.b16 %v198, %v194
    %v243 = vpack.c.b16 %v199, %v195
    %v244 = vpack.c.b16 %v200, %v196
    %v245 = vpack.c.b16 %v201, %v197
    %v246 = vpack.c.b16 %v206, %v202
    %v247 = vpack.c.b16 %v207, %v203
    %v248 = vpack.c.b16 %v208, %v204
    %v249 = vpack.c.b16 %v209, %v205
    %v250 = vpack.c.b16 %v214, %v210
    %v251 = vpack.c.b16 %v215, %v211
    %v252 = vpack.c.b16 %v216, %v212
    %v253 = vpack.c.b16 %v217, %v213
    %v254 = vpack.c.b16 %v222, %v218
    %v255 = vpack.c.b16 %v223, %v219
    %v256 = vpack.c.b16 %v224, %v220
    %v257 = vpack.c.b16 %v225, %v221
    %290 = vmatprep.subr.bf16.mxu0 %v255
    %291 = vmatpush1.bf16.msra.mxu0 %v254
    %292 = vmatprep.subr.bf16.mxu0 %v251
    %293 = vmatpush1.bf16.msra.mxu0 %v250
    %294 = vmatprep.subr.bf16.mxu0 %v247
    %295 = vmatpush1.bf16.msra.mxu0 %v246
    %296 = vmatprep.subr.bf16.mxu0 %v243
    %297 = vmatpush1.bf16.msra.mxu0 %v242
    %298 = vmatprep.subr.bf16.mxu0 %v239
    %299 = vmatpush1.bf16.msra.mxu0 %v238
    %300 = vmatprep.subr.bf16.mxu0 %v235
    %301 = vmatpush1.bf16.msra.mxu0 %v234
    %302 = vmatprep.subr.bf16.mxu0 %v231
    %303 = vmatpush1.bf16.msra.mxu0 %v230
    %304 = vmatprep.subr.bf16.mxu0 %v227
    %305 = vmatpush1.bf16.msra.mxu0 %v226
    %306 = vmatprep.subr.bf16.mxu0 0
    %307 = vmatpush2.bf16.msra.mxu0 0
    %308 = vmatprep.subr.bf16.mxu0 0
    %309 = vmatpush2.bf16.msra.mxu0 0
    %310 = vmatprep.subr.bf16.mxu0 0
    %311 = vmatpush2.bf16.msra.mxu0 0
    %312 = vmatprep.subr.bf16.mxu0 0
    %313 = vmatpush2.bf16.msra.mxu0 0
    %314 = vmatprep.subr.bf16.mxu0 0
    %315 = vmatpush2.bf16.msra.mxu0 0
    %316 = vmatprep.subr.bf16.mxu0 0
    %317 = vmatpush2.bf16.msra.mxu0 0
    %318 = vmatprep.subr.bf16.mxu0 0
    %319 = vmatpush2.bf16.msra.mxu0 0
    %320 = vmatprep.subr.bf16.mxu0 0
    %321 = vmatpush2.bf16.msra.mxu0 0
    %322 = vmatprep.mubr.bf16.mxu0 0
    %323 = vmatmul.mubr.bf16.gmra.mxu0 %v122
    %v324 = vpop.f32.mrf.mxu0
    %v325 = vadd.f32 0.0, %v324
    %v326 = vpop.f32.mrf.mxu0
    %v327 = vadd.f32 0.0, %v326
    %v328 = vpop.f32.mrf.mxu0
    %v329 = vadd.f32 0.0, %v328
    %v330 = vpop.f32.mrf.mxu0
    %v331 = vadd.f32 0.0, %v330
    %332 = vmatprep.mubr.bf16.mxu0 0
    %333 = vmatmul.mubr.bf16.gmra.mxu0 %v123
    %v334 = vpop.f32.mrf.mxu0
    %v335 = vadd.f32 0.0, %v334
    %v336 = vpop.f32.mrf.mxu0
    %v337 = vadd.f32 0.0, %v336
    %v338 = vpop.f32.mrf.mxu0
    %v339 = vadd.f32 0.0, %v338
    %v340 = vpop.f32.mrf.mxu0
    %v341 = vadd.f32 0.0, %v340
    %342 = vmatprep.mubr.bf16.mxu0 0
    %343 = vmatmul.mubr.bf16.gmra.mxu0 %v124
    %v344 = vpop.f32.mrf.mxu0
    %v345 = vadd.f32 0.0, %v344
    %v346 = vpop.f32.mrf.mxu0
    %v347 = vadd.f32 0.0, %v346
    %v348 = vpop.f32.mrf.mxu0
    %v349 = vadd.f32 0.0, %v348
    %v350 = vpop.f32.mrf.mxu0
    %v351 = vadd.f32 0.0, %v350
    %352 = vmatprep.mubr.bf16.mxu0 0
    %353 = vmatmul.mubr.bf16.gmra.mxu0 %v125
    %v354 = vpop.f32.mrf.mxu0
    %v355 = vadd.f32 0.0, %v354
    %v356 = vpop.f32.mrf.mxu0
    %v357 = vadd.f32 0.0, %v356
    %v358 = vpop.f32.mrf.mxu0
    %v359 = vadd.f32 0.0, %v358
    %v360 = vpop.f32.mrf.mxu0
    %v361 = vadd.f32 0.0, %v360
    %362 = vdwg.mxu0
    %363 = vmatprep.subr.bf16.mxu0 %v257
    %364 = vmatpush1.bf16.msra.mxu0 %v256
    %365 = vmatprep.subr.bf16.mxu0 %v253
    %366 = vmatpush1.bf16.msra.mxu0 %v252
    %367 = vmatprep.subr.bf16.mxu0 %v249
    %368 = vmatpush1.bf16.msra.mxu0 %v248
    %369 = vmatprep.subr.bf16.mxu0 %v245
    %370 = vmatpush1.bf16.msra.mxu0 %v244
    %371 = vmatprep.subr.bf16.mxu0 %v241
    %372 = vmatpush1.bf16.msra.mxu0 %v240
    %373 = vmatprep.subr.bf16.mxu0 %v237
    %374 = vmatpush1.bf16.msra.mxu0 %v236
    %375 = vmatprep.subr.bf16.mxu0 %v233
    %376 = vmatpush1.bf16.msra.mxu0 %v232
    %377 = vmatprep.subr.bf16.mxu0 %v229
    %378 = vmatpush1.bf16.msra.mxu0 %v228
    %379 = vmatprep.subr.bf16.mxu0 0
    %380 = vmatpush2.bf16.msra.mxu0 0
    %381 = vmatprep.subr.bf16.mxu0 0
    %382 = vmatpush2.bf16.msra.mxu0 0
    %383 = vmatprep.subr.bf16.mxu0 0
    %384 = vmatpush2.bf16.msra.mxu0 0
    %385 = vmatprep.subr.bf16.mxu0 0
    %386 = vmatpush2.bf16.msra.mxu0 0
    %387 = vmatprep.subr.bf16.mxu0 0
    %388 = vmatpush2.bf16.msra.mxu0 0
    %389 = vmatprep.subr.bf16.mxu0 0
    %390 = vmatpush2.bf16.msra.mxu0 0
    %391 = vmatprep.subr.bf16.mxu0 0
    %392 = vmatpush2.bf16.msra.mxu0 0
    %393 = vmatprep.subr.bf16.mxu0 0
    %394 = vmatpush2.bf16.msra.mxu0 0
    %395 = vmatprep.mubr.bf16.mxu0 0
    %396 = vmatmul.mubr.bf16.gmra.mxu0 %v122
    %v397 = vpop.f32.mrf.mxu0
    %v398 = vadd.f32 0.0, %v397
    %v399 = vpop.f32.mrf.mxu0
    %v400 = vadd.f32 0.0, %v399
    %v401 = vpop.f32.mrf.mxu0
    %v402 = vadd.f32 0.0, %v401
    %v403 = vpop.f32.mrf.mxu0
    %v404 = vadd.f32 0.0, %v403
    %405 = vmatprep.mubr.bf16.mxu0 0
    %406 = vmatmul.mubr.bf16.gmra.mxu0 %v123
    %v407 = vpop.f32.mrf.mxu0
    %v408 = vadd.f32 0.0, %v407
    %v409 = vpop.f32.mrf.mxu0
    %v410 = vadd.f32 0.0, %v409
    %v411 = vpop.f32.mrf.mxu0
    %v412 = vadd.f32 0.0, %v411
    %v413 = vpop.f32.mrf.mxu0
    %v414 = vadd.f32 0.0, %v413
    %415 = vmatprep.mubr.bf16.mxu0 0
    %416 = vmatmul.mubr.bf16.gmra.mxu0 %v124
    %v417 = vpop.f32.mrf.mxu0
    %v418 = vadd.f32 0.0, %v417
    %v419 = vpop.f32.mrf.mxu0
    %v420 = vadd.f32 0.0, %v419
    %v421 = vpop.f32.mrf.mxu0
    %v422 = vadd.f32 0.0, %v421
    %v423 = vpop.f32.mrf.mxu0
    %v424 = vadd.f32 0.0, %v423
    %425 = vmatprep.mubr.bf16.mxu0 0
    %426 = vmatmul.mubr.bf16.gmra.mxu0 %v125
    %v427 = vpop.f32.mrf.mxu0
    %v428 = vadd.f32 0.0, %v427
    %v429 = vpop.f32.mrf.mxu0
    %v430 = vadd.f32 0.0, %v429
    %v431 = vpop.f32.mrf.mxu0
    %v432 = vadd.f32 0.0, %v431
    %v433 = vpop.f32.mrf.mxu0
    %v434 = vadd.f32 0.0, %v433
    %435 = vdwg.mxu0
    %v436 = vpack.c.bf16 %v325, %v325
    %v437 = vpack.c.bf16 %v327, %v327
    %v438 = vpack.c.bf16 %v398, %v398
    %v439 = vpack.c.bf16 %v400, %v400
    %v440 = vpack.c.bf16 %v329, %v329
    %v441 = vpack.c.bf16 %v331, %v331
    %v442 = vpack.c.bf16 %v402, %v402
    %v443 = vpack.c.bf16 %v404, %v404
    %v444 = vpack.c.bf16 %v335, %v335
    %v445 = vpack.c.bf16 %v337, %v337
    %v446 = vpack.c.bf16 %v408, %v408
    %v447 = vpack.c.bf16 %v410, %v410
    %v448 = vpack.c.bf16 %v339, %v339
    %v449 = vpack.c.bf16 %v341, %v341
    %v450 = vpack.c.bf16 %v412, %v412
    %v451 = vpack.c.bf16 %v414, %v414
    %v452 = vpack.c.bf16 %v345, %v345
    %v453 = vpack.c.bf16 %v347, %v347
    %v454 = vpack.c.bf16 %v418, %v418
    %v455 = vpack.c.bf16 %v420, %v420
    %v456 = vpack.c.bf16 %v349, %v349
    %v457 = vpack.c.bf16 %v351, %v351
    %v458 = vpack.c.bf16 %v422, %v422
    %v459 = vpack.c.bf16 %v424, %v424
    %v460 = vpack.c.bf16 %v355, %v355
    %v461 = vpack.c.bf16 %v357, %v357
    %v462 = vpack.c.bf16 %v428, %v428
    %v463 = vpack.c.bf16 %v430, %v430
    %v464 = vpack.c.bf16 %v359, %v359
    %v465 = vpack.c.bf16 %v361, %v361
    %v466 = vpack.c.bf16 %v432, %v432
    %v467 = vpack.c.bf16 %v434, %v434
    %v500 = vunpack.c.l.b16 %v436
    %v501 = vunpack.c.l.b16 %v437
    %v502 = vunpack.c.l.b16 %v438
    %v503 = vunpack.c.l.b16 %v439
    %v504 = vunpack.c.l.b16 %v440
    %v505 = vunpack.c.l.b16 %v441
    %v506 = vunpack.c.l.b16 %v442
    %v507 = vunpack.c.l.b16 %v443
    %v508 = vunpack.c.l.b16 %v444
    %v509 = vunpack.c.l.b16 %v445
    %v510 = vunpack.c.l.b16 %v446
    %v511 = vunpack.c.l.b16 %v447
    %v512 = vunpack.c.l.b16 %v448
    %v513 = vunpack.c.l.b16 %v449
    %v514 = vunpack.c.l.b16 %v450
    %v515 = vunpack.c.l.b16 %v451
    %v516 = vunpack.c.l.b16 %v452
    %v517 = vunpack.c.l.b16 %v453
    %v518 = vunpack.c.l.b16 %v454
    %v519 = vunpack.c.l.b16 %v455
    %v520 = vunpack.c.l.b16 %v456
    %v521 = vunpack.c.l.b16 %v457
    %v522 = vunpack.c.l.b16 %v458
    %v523 = vunpack.c.l.b16 %v459
    %v524 = vunpack.c.l.b16 %v460
    %v525 = vunpack.c.l.b16 %v461
    %v526 = vunpack.c.l.b16 %v462
    %v527 = vunpack.c.l.b16 %v463
    %v528 = vunpack.c.l.b16 %v464
    %v529 = vunpack.c.l.b16 %v465
    %v530 = vunpack.c.l.b16 %v466
    %v531 = vunpack.c.l.b16 %v467
    %v532 = vpack.c.b16 %v501, %v500
    %v533 = vpack.c.b16 %v503, %v502
    %v534 = vpack.c.b16 %v505, %v504
    %v535 = vpack.c.b16 %v507, %v506
    %v536 = vpack.c.b16 %v509, %v508
    %v537 = vpack.c.b16 %v511, %v510
    %v538 = vpack.c.b16 %v513, %v512
    %v539 = vpack.c.b16 %v515, %v514
    %v540 = vpack.c.b16 %v517, %v516
    %v541 = vpack.c.b16 %v519, %v518
    %v542 = vpack.c.b16 %v521, %v520
    %v543 = vpack.c.b16 %v523, %v522
    %v544 = vpack.c.b16 %v525, %v524
    %v545 = vpack.c.b16 %v527, %v526
    %v546 = vpack.c.b16 %v529, %v528
    %v547 = vpack.c.b16 %v531, %v530
    %564 = vst [vmem:[#allocation2] sm:$0xff] %v532
    %565 = vst [vmem:[#allocation2 + $0x8] sm:$0xff] %v533
    %566 = vst [vmem:[#allocation2 + $0x10] sm:$0xff] %v534
    %567 = vst [vmem:[#allocation2 + $0x18] sm:$0xff] %v535
    %568 = vst [vmem:[#allocation2 + $0x20] sm:$0xff] %v536
    %569 = vst [vmem:[#allocation2 + $0x28] sm:$0xff] %v537
    %570 = vst [vmem:[#allocation2 + $0x30] sm:$0xff] %v538
    %571 = vst [vmem:[#allocation2 + $0x38] sm:$0xff] %v539
    %572 = vst [vmem:[#allocation2 + $0x40] sm:$0xff] %v540
    %573 = vst [vmem:[#allocation2 + $0x48] sm:$0xff] %v541
    %574 = vst [vmem:[#allocation2 + $0x50] sm:$0xff] %v542
    %575 = vst [vmem:[#allocation2 + $0x58] sm:$0xff] %v543
    %576 = vst [vmem:[#allocation2 + $0x60] sm:$0xff] %v544
    %577 = vst [vmem:[#allocation2 + $0x68] sm:$0xff] %v545
    %578 = vst [vmem:[#allocation2 + $0x70] sm:$0xff] %v546
    %579 = vst [vmem:[#allocation2 + $0x78] sm:$0xff] %v547
    %v580 = vld [vmem:[#allocation10] sm:$0xff]
    %v581 = vld [vmem:[#allocation10 + $0x8] sm:$0xff]
    %v582 = vld [vmem:[#allocation10 + $0x10] sm:$0xff]
    %v583 = vld [vmem:[#allocation10 + $0x18] sm:$0xff]
    %v584 = vld [vmem:[#allocation10 + $0x20] sm:$0xff]
    %v585 = vld [vmem:[#allocation10 + $0x28] sm:$0xff]
    %v586 = vld [vmem:[#allocation10 + $0x30] sm:$0xff]
    %v587 = vld [vmem:[#allocation10 + $0x38] sm:$0xff]
    %v588 = vld [vmem:[#allocation10 + $0x40] sm:$0xff]
    %v589 = vld [vmem:[#allocation10 + $0x48] sm:$0xff]
    %v590 = vld [vmem:[#allocation10 + $0x50] sm:$0xff]
    %v591 = vld [vmem:[#allocation10 + $0x58] sm:$0xff]
    %v592 = vld [vmem:[#allocation10 + $0x60] sm:$0xff]
    %v593 = vld [vmem:[#allocation10 + $0x68] sm:$0xff]
    %v594 = vld [vmem:[#allocation10 + $0x70] sm:$0xff]
    %v595 = vld [vmem:[#allocation10 + $0x78] sm:$0xff]
    %v596 = vld [vmem:[#allocation10 + $0x80] sm:$0xff]
    %v597 = vld [vmem:[#allocation10 + $0x88] sm:$0xff]
    %v598 = vld [vmem:[#allocation10 + $0x90] sm:$0xff]
    %v599 = vld [vmem:[#allocation10 + $0x98] sm:$0xff]
    %v600 = vld [vmem:[#allocation10 + $0xa0] sm:$0xff]
    %v601 = vld [vmem:[#allocation10 + $0xa8] sm:$0xff]
    %v602 = vld [vmem:[#allocation10 + $0xb0] sm:$0xff]
    %v603 = vld [vmem:[#allocation10 + $0xb8] sm:$0xff]
    %v604 = vld [vmem:[#allocation10 + $0xc0] sm:$0xff]
    %v605 = vld [vmem:[#allocation10 + $0xc8] sm:$0xff]
    %v606 = vld [vmem:[#allocation10 + $0xd0] sm:$0xff]
    %v607 = vld [vmem:[#allocation10 + $0xd8] sm:$0xff]
    %v608 = vld [vmem:[#allocation10 + $0xe0] sm:$0xff]
    %v609 = vld [vmem:[#allocation10 + $0xe8] sm:$0xff]
    %v610 = vld [vmem:[#allocation10 + $0xf0] sm:$0xff]
    %v611 = vld [vmem:[#allocation10 + $0xf8] sm:$0xff]
    %v612 = vld [vmem:[%s3] sm:$0xf]
    %v613 = vld [vmem:[#allocation3] sm:$0xff]
    %v614 = vld [vmem:[#allocation4] sm:$0xff]
    %v615 = vld [vmem:[#allocation2] sm:$0xff]
    %v616 = vld [vmem:[#allocation2 + $0x8] sm:$0xff]
    %v617 = vunpack.c.l.bf16 %v615
    %v618 = vunpack.c.h.bf16 %v615
    %v619 = vunpack.c.l.bf16 %v616
    %v620 = vunpack.c.h.bf16 %v616
    %v622 = vlaneseq
    %v623 = vshrl.u32 %v622, 7
    %v624 = vsub.s32 0, %v623
    %v625 = vrot.slane %v612, %v624
    %v626 = vlaneseq
    %v627 = vshrl.u32 %v626, 7
    %v628 = vsub.s32 1, %v627
    %v629 = vrot.slane %v612, %v628
    %v630 = vlaneseq
    %v631 = vshrl.u32 %v630, 7
    %v632 = vsub.s32 2, %v631
    %v633 = vrot.slane %v612, %v632
    %v634 = vlaneseq
    %v635 = vshrl.u32 %v634, 7
    %v636 = vsub.s32 3, %v635
    %v637 = vrot.slane %v612, %v636
    %v642 = vadd.f32 %v617, %v625
    %v643 = vadd.f32 %v618, %v629
    %v644 = vadd.f32 %v619, %v633
    %v645 = vadd.f32 %v620, %v637
    %v646 = vpack.c.bf16 %v613, %v613
    %v679 = vunpack.c.l.b16 %v580
    %v680 = vunpack.c.h.b16 %v580
    %v681 = vunpack.c.l.b16 %v581
    %v682 = vunpack.c.h.b16 %v581
    %v683 = vunpack.c.l.b16 %v582
    %v684 = vunpack.c.h.b16 %v582
    %v685 = vunpack.c.l.b16 %v583
    %v686 = vunpack.c.h.b16 %v583
    %v687 = vunpack.c.l.b16 %v584
    %v688 = vunpack.c.h.b16 %v584
    %v689 = vunpack.c.l.b16 %v585
    %v690 = vunpack.c.h.b16 %v585
    %v691 = vunpack.c.l.b16 %v586
    %v692 = vunpack.c.h.b16 %v586
    %v693 = vunpack.c.l.b16 %v587
    %v694 = vunpack.c.h.b16 %v587
    %v695 = vunpack.c.l.b16 %v588
    %v696 = vunpack.c.h.b16 %v588
    %v697 = vunpack.c.l.b16 %v589
    %v698 = vunpack.c.h.b16 %v589
    %v699 = vunpack.c.l.b16 %v590
    %v700 = vunpack.c.h.b16 %v590
    %v701 = vunpack.c.l.b16 %v591
    %v702 = vunpack.c.h.b16 %v591
    %v703 = vunpack.c.l.b16 %v592
    %v704 = vunpack.c.h.b16 %v592
    %v705 = vunpack.c.l.b16 %v593
    %v706 = vunpack.c.h.b16 %v593
    %v707 = vunpack.c.l.b16 %v594
    %v708 = vunpack.c.h.b16 %v594
    %v709 = vunpack.c.l.b16 %v595
    %v710 = vunpack.c.h.b16 %v595
    %v711 = vunpack.c.l.b16 %v596
    %v712 = vunpack.c.h.b16 %v596
    %v713 = vunpack.c.l.b16 %v597
    %v714 = vunpack.c.h.b16 %v597
    %v715 = vunpack.c.l.b16 %v598
    %v716 = vunpack.c.h.b16 %v598
    %v717 = vunpack.c.l.b16 %v599
    %v718 = vunpack.c.h.b16 %v599
    %v719 = vunpack.c.l.b16 %v600
    %v720 = vunpack.c.h.b16 %v600
    %v721 = vunpack.c.l.b16 %v601
    %v722 = vunpack.c.h.b16 %v601
    %v723 = vunpack.c.l.b16 %v602
    %v724 = vunpack.c.h.b16 %v602
    %v725 = vunpack.c.l.b16 %v603
    %v726 = vunpack.c.h.b16 %v603
    %v727 = vunpack.c.l.b16 %v604
    %v728 = vunpack.c.h.b16 %v604
    %v729 = vunpack.c.l.b16 %v605
    %v730 = vunpack.c.h.b16 %v605
    %v731 = vunpack.c.l.b16 %v606
    %v732 = vunpack.c.h.b16 %v606
    %v733 = vunpack.c.l.b16 %v607
    %v734 = vunpack.c.h.b16 %v607
    %v735 = vunpack.c.l.b16 %v608
    %v736 = vunpack.c.h.b16 %v608
    %v737 = vunpack.c.l.b16 %v609
    %v738 = vunpack.c.h.b16 %v609
    %v739 = vunpack.c.l.b16 %v610
    %v740 = vunpack.c.h.b16 %v610
    %v741 = vunpack.c.l.b16 %v611
    %v742 = vunpack.c.h.b16 %v611
    %v743 = vpack.c.b16 %v683, %v679
    %v744 = vpack.c.b16 %v684, %v680
    %v745 = vpack.c.b16 %v685, %v681
    %v746 = vpack.c.b16 %v686, %v682
    %v747 = vpack.c.b16 %v691, %v687
    %v748 = vpack.c.b16 %v692, %v688
    %v749 = vpack.c.b16 %v693, %v689
    %v750 = vpack.c.b16 %v694, %v690
    %v751 = vpack.c.b16 %v699, %v695
    %v752 = vpack.c.b16 %v700, %v696
    %v753 = vpack.c.b16 %v701, %v697
    %v754 = vpack.c.b16 %v702, %v698
    %v755 = vpack.c.b16 %v707, %v703
    %v756 = vpack.c.b16 %v708, %v704
    %v757 = vpack.c.b16 %v709, %v705
    %v758 = vpack.c.b16 %v710, %v706
    %v759 = vpack.c.b16 %v715, %v711
    %v760 = vpack.c.b16 %v716, %v712
    %v761 = vpack.c.b16 %v717, %v713
    %v762 = vpack.c.b16 %v718, %v714
    %v763 = vpack.c.b16 %v723, %v719
    %v764 = vpack.c.b16 %v724, %v720
    %v765 = vpack.c.b16 %v725, %v721
    %v766 = vpack.c.b16 %v726, %v722
    %v767 = vpack.c.b16 %v731, %v727
    %v768 = vpack.c.b16 %v732, %v728
    %v769 = vpack.c.b16 %v733, %v729
    %v770 = vpack.c.b16 %v734, %v730
    %v771 = vpack.c.b16 %v739, %v735
    %v772 = vpack.c.b16 %v740, %v736
    %v773 = vpack.c.b16 %v741, %v737
    %v774 = vpack.c.b16 %v742, %v738
    %807 = vmatprep.subr.bf16.mxu0 %v772
    %808 = vmatpush1.bf16.msra.mxu0 %v771
    %809 = vmatprep.subr.bf16.mxu0 %v768
    %810 = vmatpush1.bf16.msra.mxu0 %v767
    %811 = vmatprep.subr.bf16.mxu0 %v764
    %812 = vmatpush1.bf16.msra.mxu0 %v763
    %813 = vmatprep.subr.bf16.mxu0 %v760
    %814 = vmatpush1.bf16.msra.mxu0 %v759
    %815 = vmatprep.subr.bf16.mxu0 %v756
    %816 = vmatpush1.bf16.msra.mxu0 %v755
    %817 = vmatprep.subr.bf16.mxu0 %v752
    %818 = vmatpush1.bf16.msra.mxu0 %v751
    %819 = vmatprep.subr.bf16.mxu0 %v748
    %820 = vmatpush1.bf16.msra.mxu0 %v747
    %821 = vmatprep.subr.bf16.mxu0 %v744
    %822 = vmatpush1.bf16.msra.mxu0 %v743
    %823 = vmatprep.subr.bf16.mxu0 0
    %824 = vmatpush2.bf16.msra.mxu0 0
    %825 = vmatprep.subr.bf16.mxu0 0
    %826 = vmatpush2.bf16.msra.mxu0 0
    %827 = vmatprep.subr.bf16.mxu0 0
    %828 = vmatpush2.bf16.msra.mxu0 0
    %829 = vmatprep.subr.bf16.mxu0 0
    %830 = vmatpush2.bf16.msra.mxu0 0
    %831 = vmatprep.subr.bf16.mxu0 0
    %832 = vmatpush2.bf16.msra.mxu0 0
    %833 = vmatprep.subr.bf16.mxu0 0
    %834 = vmatpush2.bf16.msra.mxu0 0
    %835 = vmatprep.subr.bf16.mxu0 0
    %836 = vmatpush2.bf16.msra.mxu0 0
    %837 = vmatprep.subr.bf16.mxu0 0
    %838 = vmatpush2.bf16.msra.mxu0 0
    %839 = vmatprep.mubr.bf16.mxu0 0
    %840 = vmatmul.mubr.bf16.gmra.mxu0 %v646
    %v841 = vpop.f32.mrf.mxu0
    %v842 = vadd.f32 0.0, %v841
    %v843 = vpop.f32.mrf.mxu0
    %v844 = vadd.f32 0.0, %v843
    %v845 = vpop.f32.mrf.mxu0
    %v846 = vpop.f32.mrf.mxu0
    %847 = vdwg.mxu0
    %848 = vmatprep.subr.bf16.mxu0 %v774
    %849 = vmatpush1.bf16.msra.mxu0 %v773
    %850 = vmatprep.subr.bf16.mxu0 %v770
    %851 = vmatpush1.bf16.msra.mxu0 %v769
    %852 = vmatprep.subr.bf16.mxu0 %v766
    %853 = vmatpush1.bf16.msra.mxu0 %v765
    %854 = vmatprep.subr.bf16.mxu0 %v762
    %855 = vmatpush1.bf16.msra.mxu0 %v761
    %856 = vmatprep.subr.bf16.mxu0 %v758
    %857 = vmatpush1.bf16.msra.mxu0 %v757
    %858 = vmatprep.subr.bf16.mxu0 %v754
    %859 = vmatpush1.bf16.msra.mxu0 %v753
    %860 = vmatprep.subr.bf16.mxu0 %v750
    %861 = vmatpush1.bf16.msra.mxu0 %v749
    %862 = vmatprep.subr.bf16.mxu0 %v746
    %863 = vmatpush1.bf16.msra.mxu0 %v745
    %864 = vmatprep.subr.bf16.mxu0 0
    %865 = vmatpush2.bf16.msra.mxu0 0
    %866 = vmatprep.subr.bf16.mxu0 0
    %867 = vmatpush2.bf16.msra.mxu0 0
    %868 = vmatprep.subr.bf16.mxu0 0
    %869 = vmatpush2.bf16.msra.mxu0 0
    %870 = vmatprep.subr.bf16.mxu0 0
    %871 = vmatpush2.bf16.msra.mxu0 0
    %872 = vmatprep.subr.bf16.mxu0 0
    %873 = vmatpush2.bf16.msra.mxu0 0
    %874 = vmatprep.subr.bf16.mxu0 0
    %875 = vmatpush2.bf16.msra.mxu0 0
    %876 = vmatprep.subr.bf16.mxu0 0
    %877 = vmatpush2.bf16.msra.mxu0 0
    %878 = vmatprep.subr.bf16.mxu0 0
    %879 = vmatpush2.bf16.msra.mxu0 0
    %880 = vmatprep.mubr.bf16.mxu0 0
    %881 = vmatmul.mubr.bf16.gmra.mxu0 %v646
    %v882 = vpop.f32.mrf.mxu0
    %v883 = vadd.f32 0.0, %v882
    %v884 = vpop.f32.mrf.mxu0
    %v885 = vadd.f32 0.0, %v884
    %v886 = vpop.f32.mrf.mxu0
    %v887 = vpop.f32.mrf.mxu0
    %888 = vdwg.mxu0
    %v889 = vadd.f32 %v642, %v842
    %v890 = vadd.f32 %v643, %v844
    %v891 = vadd.f32 %v644, %v883
    %v892 = vadd.f32 %v645, %v885
    %v893 = vxor.u32 %v889, 2147483648
    %v894 = vxor.u32 %v890, 2147483648
    %v895 = vxor.u32 %v891, 2147483648
    %v896 = vmul.f32 %v893, 1.442695
    %v897 = vpow.pop %v896
    %v898 = vmul.f32 %v894, 1.442695
    %v899 = vpow.pop %v898
    %v900 = vmul.f32 %v895, 1.442695
    %v901 = vpow.pop %v900
    %v902 = vadd.f32 %v897, 1.0
    %v903 = vadd.f32 %v899, 1.0
    %v904 = vadd.f32 %v901, 1.0
    %v905 = vrcp.pop %v902
    %v906 = vmul.f32 1.0, %v905
    %v907 = vrcp.pop %v903
    %v908 = vmul.f32 1.0, %v907
    %v909 = vrcp.pop %v904
    %v910 = vmul.f32 1.0, %v909
    %v911 = vtanh.pop %v892
    %v912 = vmul.f32 %v908, %v614
    %v913 = vmul.f32 %v906, %v911
    %v914 = vadd.f32 %v912, %v913
    %v915 = vtanh.pop %v914
    %v916 = vmul.f32 %v910, %v915
    %s917 = scalar_lea.vmem [#allocation2], 16
    %v918 = vld [vmem:[%s917] sm:$0xff]
    %v919 = vld [vmem:[%s917 + $0x8] sm:$0xff]
    %v920 = vunpack.c.l.bf16 %v918
    %v921 = vunpack.c.h.bf16 %v918
    %v922 = vunpack.c.l.bf16 %v919
    %v923 = vunpack.c.h.bf16 %v919
    %v924 = vadd.f32 %v920, %v625
    %v925 = vadd.f32 %v921, %v629
    %v926 = vadd.f32 %v922, %v633
    %v927 = vadd.f32 %v923, %v637
    %v928 = vpack.c.bf16 %v916, %v916
    %929 = vmatprep.subr.bf16.mxu0 %v772
    %930 = vmatpush1.bf16.msra.mxu0 %v771
    %931 = vmatprep.subr.bf16.mxu0 %v768
    %932 = vmatpush1.bf16.msra.mxu0 %v767
    %933 = vmatprep.subr.bf16.mxu0 %v764
    %934 = vmatpush1.bf16.msra.mxu0 %v763
    %935 = vmatprep.subr.bf16.mxu0 %v760
    %936 = vmatpush1.bf16.msra.mxu0 %v759
    %937 = vmatprep.subr.bf16.mxu0 %v756
    %938 = vmatpush1.bf16.msra.mxu0 %v755
    %939 = vmatprep.subr.bf16.mxu0 %v752
    %940 = vmatpush1.bf16.msra.mxu0 %v751
    %941 = vmatprep.subr.bf16.mxu0 %v748
    %942 = vmatpush1.bf16.msra.mxu0 %v747
    %943 = vmatprep.subr.bf16.mxu0 %v744
    %944 = vmatpush1.bf16.msra.mxu0 %v743
    %945 = vmatprep.subr.bf16.mxu0 0
    %946 = vmatpush2.bf16.msra.mxu0 0
    %947 = vmatprep.subr.bf16.mxu0 0
    %948 = vmatpush2.bf16.msra.mxu0 0
    %949 = vmatprep.subr.bf16.mxu0 0
    %950 = vmatpush2.bf16.msra.mxu0 0
    %951 = vmatprep.subr.bf16.mxu0 0
    %952 = vmatpush2.bf16.msra.mxu0 0
    %953 = vmatprep.subr.bf16.mxu0 0
    %954 = vmatpush2.bf16.msra.mxu0 0
    %955 = vmatprep.subr.bf16.mxu0 0
    %956 = vmatpush2.bf16.msra.mxu0 0
    %957 = vmatprep.subr.bf16.mxu0 0
    %958 = vmatpush2.bf16.msra.mxu0 0
    %959 = vmatprep.subr.bf16.mxu0 0
    %960 = vmatpush2.bf16.msra.mxu0 0
    %961 = vmatprep.mubr.bf16.mxu0 0
    %962 = vmatmul.mubr.bf16.gmra.mxu0 %v928
    %v963 = vpop.f32.mrf.mxu0
    %v964 = vadd.f32 0.0, %v963
    %v965 = vpop.f32.mrf.mxu0
    %v966 = vadd.f32 0.0, %v965
    %v967 = vpop.f32.mrf.mxu0
    %v968 = vpop.f32.mrf.mxu0
    %969 = vdwg.mxu0
    %970 = vmatprep.subr.bf16.mxu0 %v774
    %971 = vmatpush1.bf16.msra.mxu0 %v773
    %972 = vmatprep.subr.bf16.mxu0 %v770
    %973 = vmatpush1.bf16.msra.mxu0 %v769
    %974 = vmatprep.subr.bf16.mxu0 %v766
    %975 = vmatpush1.bf16.msra.mxu0 %v765
    %976 = vmatprep.subr.bf16.mxu0 %v762
    %977 = vmatpush1.bf16.msra.mxu0 %v761
    %978 = vmatprep.subr.bf16.mxu0 %v758
    %979 = vmatpush1.bf16.msra.mxu0 %v757
    %980 = vmatprep.subr.bf16.mxu0 %v754
    %981 = vmatpush1.bf16.msra.mxu0 %v753
    %982 = vmatprep.subr.bf16.mxu0 %v750
    %983 = vmatpush1.bf16.msra.mxu0 %v749
    %984 = vmatprep.subr.bf16.mxu0 %v746
    %985 = vmatpush1.bf16.msra.mxu0 %v745
    %986 = vmatprep.subr.bf16.mxu0 0
    %987 = vmatpush2.bf16.msra.mxu0 0
    %988 = vmatprep.subr.bf16.mxu0 0
    %989 = vmatpush2.bf16.msra.mxu0 0
    %990 = vmatprep.subr.bf16.mxu0 0
    %991 = vmatpush2.bf16.msra.mxu0 0
    %992 = vmatprep.subr.bf16.mxu0 0
    %993 = vmatpush2.bf16.msra.mxu0 0
    %994 = vmatprep.subr.bf16.mxu0 0
    %995 = vmatpush2.bf16.msra.mxu0 0
    %996 = vmatprep.subr.bf16.mxu0 0
    %997 = vmatpush2.bf16.msra.mxu0 0
    %998 = vmatprep.subr.bf16.mxu0 0
    %999 = vmatpush2.bf16.msra.mxu0 0
    %1000 = vmatprep.subr.bf16.mxu0 0
    %1001 = vmatpush2.bf16.msra.mxu0 0
    %1002 = vmatprep.mubr.bf16.mxu0 0
    %1003 = vmatmul.mubr.bf16.gmra.mxu0 %v928
    %v1004 = vpop.f32.mrf.mxu0
    %v1005 = vadd.f32 0.0, %v1004
    %v1006 = vpop.f32.mrf.mxu0
    %v1007 = vadd.f32 0.0, %v1006
    %v1008 = vpop.f32.mrf.mxu0
    %v1009 = vpop.f32.mrf.mxu0
    %1010 = vdwg.mxu0
    %v1011 = vadd.f32 %v924, %v964
    %v1012 = vadd.f32 %v925, %v966
    %v1013 = vadd.f32 %v926, %v1005
    %v1014 = vadd.f32 %v927, %v1007
    %v1015 = vxor.u32 %v1011, 2147483648
    %v1016 = vxor.u32 %v1012, 2147483648
    %v1017 = vxor.u32 %v1013, 2147483648
    %v1018 = vmul.f32 %v1015, 1.442695
    %v1019 = vpow.pop %v1018
    %v1020 = vmul.f32 %v1016, 1.442695
    %v1021 = vpow.pop %v1020
    %v1022 = vmul.f32 %v1017, 1.442695
    %v1023 = vpow.pop %v1022
    %v1024 = vadd.f32 %v1019, 1.0
    %v1025 = vadd.f32 %v1021, 1.0
    %v1026 = vadd.f32 %v1023, 1.0
    %v1027 = vrcp.pop %v1024
    %v1028 = vmul.f32 1.0, %v1027
    %v1029 = vrcp.pop %v1025
    %v1030 = vmul.f32 1.0, %v1029
    %v1031 = vrcp.pop %v1026
    %v1032 = vmul.f32 1.0, %v1031
    %v1033 = vtanh.pop %v1014
    %v1034 = vmul.f32 %v1030, %v914
    %v1035 = vmul.f32 %v1028, %v1033
    %v1036 = vadd.f32 %v1034, %v1035
    %v1037 = vtanh.pop %v1036
    %v1038 = vmul.f32 %v1032, %v1037
    %s1039 = scalar_lea.vmem [#allocation2], 32
    %v1040 = vld [vmem:[%s1039] sm:$0xff]
    %v1041 = vld [vmem:[%s1039 + $0x8] sm:$0xff]
    %v1042 = vunpack.c.l.bf16 %v1040
    %v1043 = vunpack.c.h.bf16 %v1040
    %v1044 = vunpack.c.l.bf16 %v1041
    %v1045 = vunpack.c.h.bf16 %v1041
    %v1046 = vadd.f32 %v1042, %v625
    %v1047 = vadd.f32 %v1043, %v629
    %v1048 = vadd.f32 %v1044, %v633
    %v1049 = vadd.f32 %v1045, %v637
    %v1050 = vpack.c.bf16 %v1038, %v1038
    %1051 = vmatprep.subr.bf16.mxu0 %v772
    %1052 = vmatpush1.bf16.msra.mxu0 %v771
    %1053 = vmatprep.subr.bf16.mxu0 %v768
    %1054 = vmatpush1.bf16.msra.mxu0 %v767
    %1055 = vmatprep.subr.bf16.mxu0 %v764
    %1056 = vmatpush1.bf16.msra.mxu0 %v763
    %1057 = vmatprep.subr.bf16.mxu0 %v760
    %1058 = vmatpush1.bf16.msra.mxu0 %v759
    %1059 = vmatprep.subr.bf16.mxu0 %v756
    %1060 = vmatpush1.bf16.msra.mxu0 %v755
    %1061 = vmatprep.subr.bf16.mxu0 %v752
    %1062 = vmatpush1.bf16.msra.mxu0 %v751
    %1063 = vmatprep.subr.bf16.mxu0 %v748
    %1064 = vmatpush1.bf16.msra.mxu0 %v747
    %1065 = vmatprep.subr.bf16.mxu0 %v744
    %1066 = vmatpush1.bf16.msra.mxu0 %v743
    %1067 = vmatprep.subr.bf16.mxu0 0
    %1068 = vmatpush2.bf16.msra.mxu0 0
    %1069 = vmatprep.subr.bf16.mxu0 0
    %1070 = vmatpush2.bf16.msra.mxu0 0
    %1071 = vmatprep.subr.bf16.mxu0 0
    %1072 = vmatpush2.bf16.msra.mxu0 0
    %1073 = vmatprep.subr.bf16.mxu0 0
    %1074 = vmatpush2.bf16.msra.mxu0 0
    %1075 = vmatprep.subr.bf16.mxu0 0
    %1076 = vmatpush2.bf16.msra.mxu0 0
    %1077 = vmatprep.subr.bf16.mxu0 0
    %1078 = vmatpush2.bf16.msra.mxu0 0
    %1079 = vmatprep.subr.bf16.mxu0 0
    %1080 = vmatpush2.bf16.msra.mxu0 0
    %1081 = vmatprep.subr.bf16.mxu0 0
    %1082 = vmatpush2.bf16.msra.mxu0 0
    %1083 = vmatprep.mubr.bf16.mxu0 0
    %1084 = vmatmul.mubr.bf16.gmra.mxu0 %v1050
    %v1085 = vpop.f32.mrf.mxu0
    %v1086 = vadd.f32 0.0, %v1085
    %v1087 = vpop.f32.mrf.mxu0
    %v1088 = vadd.f32 0.0, %v1087
    %v1089 = vpop.f32.mrf.mxu0
    %v1090 = vpop.f32.mrf.mxu0
    %1091 = vdwg.mxu0
    %1092 = vmatprep.subr.bf16.mxu0 %v774
    %1093 = vmatpush1.bf16.msra.mxu0 %v773
    %1094 = vmatprep.subr.bf16.mxu0 %v770
    %1095 = vmatpush1.bf16.msra.mxu0 %v769
    %1096 = vmatprep.subr.bf16.mxu0 %v766
    %1097 = vmatpush1.bf16.msra.mxu0 %v765
    %1098 = vmatprep.subr.bf16.mxu0 %v762
    %1099 = vmatpush1.bf16.msra.mxu0 %v761
    %1100 = vmatprep.subr.bf16.mxu0 %v758
    %1101 = vmatpush1.bf16.msra.mxu0 %v757
    %1102 = vmatprep.subr.bf16.mxu0 %v754
    %1103 = vmatpush1.bf16.msra.mxu0 %v753
    %1104 = vmatprep.subr.bf16.mxu0 %v750
    %1105 = vmatpush1.bf16.msra.mxu0 %v749
    %1106 = vmatprep.subr.bf16.mxu0 %v746
    %1107 = vmatpush1.bf16.msra.mxu0 %v745
    %1108 = vmatprep.subr.bf16.mxu0 0
    %1109 = vmatpush2.bf16.msra.mxu0 0
    %1110 = vmatprep.subr.bf16.mxu0 0
    %1111 = vmatpush2.bf16.msra.mxu0 0
    %1112 = vmatprep.subr.bf16.mxu0 0
    %1113 = vmatpush2.bf16.msra.mxu0 0
    %1114 = vmatprep.subr.bf16.mxu0 0
    %1115 = vmatpush2.bf16.msra.mxu0 0
    %1116 = vmatprep.subr.bf16.mxu0 0
    %1117 = vmatpush2.bf16.msra.mxu0 0
    %1118 = vmatprep.subr.bf16.mxu0 0
    %1119 = vmatpush2.bf16.msra.mxu0 0
    %1120 = vmatprep.subr.bf16.mxu0 0
    %1121 = vmatpush2.bf16.msra.mxu0 0
    %1122 = vmatprep.subr.bf16.mxu0 0
    %1123 = vmatpush2.bf16.msra.mxu0 0
    %1124 = vmatprep.mubr.bf16.mxu0 0
    %1125 = vmatmul.mubr.bf16.gmra.mxu0 %v1050
    %v1126 = vpop.f32.mrf.mxu0
    %v1127 = vadd.f32 0.0, %v1126
    %v1128 = vpop.f32.mrf.mxu0
    %v1129 = vadd.f32 0.0, %v1128
    %v1130 = vpop.f32.mrf.mxu0
    %v1131 = vpop.f32.mrf.mxu0
    %1132 = vdwg.mxu0
    %v1133 = vadd.f32 %v1046, %v1086
    %v1134 = vadd.f32 %v1047, %v1088
    %v1135 = vadd.f32 %v1048, %v1127
    %v1136 = vadd.f32 %v1049, %v1129
    %v1137 = vxor.u32 %v1133, 2147483648
    %v1138 = vxor.u32 %v1134, 2147483648
    %v1139 = vxor.u32 %v1135, 2147483648
    %v1140 = vmul.f32 %v1137, 1.442695
    %v1141 = vpow.pop %v1140
    %v1142 = vmul.f32 %v1138, 1.442695
    %v1143 = vpow.pop %v1142
    %v1144 = vmul.f32 %v1139, 1.442695
    %v1145 = vpow.pop %v1144
    %v1146 = vadd.f32 %v1141, 1.0
    %v1147 = vadd.f32 %v1143, 1.0
    %v1148 = vadd.f32 %v1145, 1.0
    %v1149 = vrcp.pop %v1146
    %v1150 = vmul.f32 1.0, %v1149
    %v1151 = vrcp.pop %v1147
    %v1152 = vmul.f32 1.0, %v1151
    %v1153 = vrcp.pop %v1148
    %v1154 = vmul.f32 1.0, %v1153
    %v1155 = vtanh.pop %v1136
    %v1156 = vmul.f32 %v1152, %v1036
    %v1157 = vmul.f32 %v1150, %v1155
    %v1158 = vadd.f32 %v1156, %v1157
    %v1159 = vtanh.pop %v1158
    %v1160 = vmul.f32 %v1154, %v1159
    %s1161 = scalar_lea.vmem [#allocation2], 48
    %v1162 = vld [vmem:[%s1161] sm:$0xff]
    %v1163 = vld [vmem:[%s1161 + $0x8] sm:$0xff]
    %v1164 = vunpack.c.l.bf16 %v1162
    %v1165 = vunpack.c.h.bf16 %v1162
    %v1166 = vunpack.c.l.bf16 %v1163
    %v1167 = vunpack.c.h.bf16 %v1163
    %v1168 = vadd.f32 %v1164, %v625
    %v1169 = vadd.f32 %v1165, %v629
    %v1170 = vadd.f32 %v1166, %v633
    %v1171 = vadd.f32 %v1167, %v637
    %v1172 = vpack.c.bf16 %v1160, %v1160
    %1173 = vmatprep.subr.bf16.mxu0 %v772
    %1174 = vmatpush1.bf16.msra.mxu0 %v771
    %1175 = vmatprep.subr.bf16.mxu0 %v768
    %1176 = vmatpush1.bf16.msra.mxu0 %v767
    %1177 = vmatprep.subr.bf16.mxu0 %v764
    %1178 = vmatpush1.bf16.msra.mxu0 %v763
    %1179 = vmatprep.subr.bf16.mxu0 %v760
    %1180 = vmatpush1.bf16.msra.mxu0 %v759
    %1181 = vmatprep.subr.bf16.mxu0 %v756
    %1182 = vmatpush1.bf16.msra.mxu0 %v755
    %1183 = vmatprep.subr.bf16.mxu0 %v752
    %1184 = vmatpush1.bf16.msra.mxu0 %v751
    %1185 = vmatprep.subr.bf16.mxu0 %v748
    %1186 = vmatpush1.bf16.msra.mxu0 %v747
    %1187 = vmatprep.subr.bf16.mxu0 %v744
    %1188 = vmatpush1.bf16.msra.mxu0 %v743
    %1189 = vmatprep.subr.bf16.mxu0 0
    %1190 = vmatpush2.bf16.msra.mxu0 0
    %1191 = vmatprep.subr.bf16.mxu0 0
    %1192 = vmatpush2.bf16.msra.mxu0 0
    %1193 = vmatprep.subr.bf16.mxu0 0
    %1194 = vmatpush2.bf16.msra.mxu0 0
    %1195 = vmatprep.subr.bf16.mxu0 0
    %1196 = vmatpush2.bf16.msra.mxu0 0
    %1197 = vmatprep.subr.bf16.mxu0 0
    %1198 = vmatpush2.bf16.msra.mxu0 0
    %1199 = vmatprep.subr.bf16.mxu0 0
    %1200 = vmatpush2.bf16.msra.mxu0 0
    %1201 = vmatprep.subr.bf16.mxu0 0
    %1202 = vmatpush2.bf16.msra.mxu0 0
    %1203 = vmatprep.subr.bf16.mxu0 0
    %1204 = vmatpush2.bf16.msra.mxu0 0
    %1205 = vmatprep.mubr.bf16.mxu0 0
    %1206 = vmatmul.mubr.bf16.gmra.mxu0 %v1172
    %v1207 = vpop.f32.mrf.mxu0
    %v1208 = vadd.f32 0.0, %v1207
    %v1209 = vpop.f32.mrf.mxu0
    %v1210 = vadd.f32 0.0, %v1209
    %v1211 = vpop.f32.mrf.mxu0
    %v1212 = vpop.f32.mrf.mxu0
    %1213 = vdwg.mxu0
    %1214 = vmatprep.subr.bf16.mxu0 %v774
    %1215 = vmatpush1.bf16.msra.mxu0 %v773
    %1216 = vmatprep.subr.bf16.mxu0 %v770
    %1217 = vmatpush1.bf16.msra.mxu0 %v769
    %1218 = vmatprep.subr.bf16.mxu0 %v766
    %1219 = vmatpush1.bf16.msra.mxu0 %v765
    %1220 = vmatprep.subr.bf16.mxu0 %v762
    %1221 = vmatpush1.bf16.msra.mxu0 %v761
    %1222 = vmatprep.subr.bf16.mxu0 %v758
    %1223 = vmatpush1.bf16.msra.mxu0 %v757
    %1224 = vmatprep.subr.bf16.mxu0 %v754
    %1225 = vmatpush1.bf16.msra.mxu0 %v753
    %1226 = vmatprep.subr.bf16.mxu0 %v750
    %1227 = vmatpush1.bf16.msra.mxu0 %v749
    %1228 = vmatprep.subr.bf16.mxu0 %v746
    %1229 = vmatpush1.bf16.msra.mxu0 %v745
    %1230 = vmatprep.subr.bf16.mxu0 0
    %1231 = vmatpush2.bf16.msra.mxu0 0
    %1232 = vmatprep.subr.bf16.mxu0 0
    %1233 = vmatpush2.bf16.msra.mxu0 0
    %1234 = vmatprep.subr.bf16.mxu0 0
    %1235 = vmatpush2.bf16.msra.mxu0 0
    %1236 = vmatprep.subr.bf16.mxu0 0
    %1237 = vmatpush2.bf16.msra.mxu0 0
    %1238 = vmatprep.subr.bf16.mxu0 0
    %1239 = vmatpush2.bf16.msra.mxu0 0
    %1240 = vmatprep.subr.bf16.mxu0 0
    %1241 = vmatpush2.bf16.msra.mxu0 0
    %1242 = vmatprep.subr.bf16.mxu0 0
    %1243 = vmatpush2.bf16.msra.mxu0 0
    %1244 = vmatprep.subr.bf16.mxu0 0
    %1245 = vmatpush2.bf16.msra.mxu0 0
    %1246 = vmatprep.mubr.bf16.mxu0 0
    %1247 = vmatmul.mubr.bf16.gmra.mxu0 %v1172
    %v1248 = vpop.f32.mrf.mxu0
    %v1249 = vadd.f32 0.0, %v1248
    %v1250 = vpop.f32.mrf.mxu0
    %v1251 = vadd.f32 0.0, %v1250
    %v1252 = vpop.f32.mrf.mxu0
    %v1253 = vpop.f32.mrf.mxu0
    %1254 = vdwg.mxu0
    %v1255 = vadd.f32 %v1168, %v1208
    %v1256 = vadd.f32 %v1169, %v1210
    %v1257 = vadd.f32 %v1170, %v1249
    %v1258 = vadd.f32 %v1171, %v1251
    %v1259 = vxor.u32 %v1255, 2147483648
    %v1260 = vxor.u32 %v1256, 2147483648
    %v1261 = vxor.u32 %v1257, 2147483648
    %v1262 = vmul.f32 %v1259, 1.442695
    %v1263 = vpow.pop %v1262
    %v1264 = vmul.f32 %v1260, 1.442695
    %v1265 = vpow.pop %v1264
    %v1266 = vmul.f32 %v1261, 1.442695
    %v1267 = vpow.pop %v1266
    %v1268 = vadd.f32 %v1263, 1.0
    %v1269 = vadd.f32 %v1265, 1.0
    %v1270 = vadd.f32 %v1267, 1.0
    %v1271 = vrcp.pop %v1268
    %v1272 = vmul.f32 1.0, %v1271
    %v1273 = vrcp.pop %v1269
    %v1274 = vmul.f32 1.0, %v1273
    %v1275 = vrcp.pop %v1270
    %v1276 = vmul.f32 1.0, %v1275
    %v1277 = vtanh.pop %v1258
    %v1278 = vmul.f32 %v1274, %v1158
    %v1279 = vmul.f32 %v1272, %v1277
    %v1280 = vadd.f32 %v1278, %v1279
    %v1281 = vtanh.pop %v1280
    %v1282 = vmul.f32 %v1276, %v1281
    %s1283 = scalar_lea.vmem [#allocation2], 64
    %v1284 = vld [vmem:[%s1283] sm:$0xff]
    %v1285 = vld [vmem:[%s1283 + $0x8] sm:$0xff]
    %v1286 = vunpack.c.l.bf16 %v1284
    %v1287 = vunpack.c.h.bf16 %v1284
    %v1288 = vunpack.c.l.bf16 %v1285
    %v1289 = vunpack.c.h.bf16 %v1285
    %v1290 = vadd.f32 %v1286, %v625
    %v1291 = vadd.f32 %v1287, %v629
    %v1292 = vadd.f32 %v1288, %v633
    %v1293 = vadd.f32 %v1289, %v637
    %v1294 = vpack.c.bf16 %v1282, %v1282
    %1295 = vmatprep.subr.bf16.mxu0 %v772
    %1296 = vmatpush1.bf16.msra.mxu0 %v771
    %1297 = vmatprep.subr.bf16.mxu0 %v768
    %1298 = vmatpush1.bf16.msra.mxu0 %v767
    %1299 = vmatprep.subr.bf16.mxu0 %v764
    %1300 = vmatpush1.bf16.msra.mxu0 %v763
    %1301 = vmatprep.subr.bf16.mxu0 %v760
    %1302 = vmatpush1.bf16.msra.mxu0 %v759
    %1303 = vmatprep.subr.bf16.mxu0 %v756
    %1304 = vmatpush1.bf16.msra.mxu0 %v755
    %1305 = vmatprep.subr.bf16.mxu0 %v752
    %1306 = vmatpush1.bf16.msra.mxu0 %v751
    %1307 = vmatprep.subr.bf16.mxu0 %v748
    %1308 = vmatpush1.bf16.msra.mxu0 %v747
    %1309 = vmatprep.subr.bf16.mxu0 %v744
    %1310 = vmatpush1.bf16.msra.mxu0 %v743
    %1311 = vmatprep.subr.bf16.mxu0 0
    %1312 = vmatpush2.bf16.msra.mxu0 0
    %1313 = vmatprep.subr.bf16.mxu0 0
    %1314 = vmatpush2.bf16.msra.mxu0 0
    %1315 = vmatprep.subr.bf16.mxu0 0
    %1316 = vmatpush2.bf16.msra.mxu0 0
    %1317 = vmatprep.subr.bf16.mxu0 0
    %1318 = vmatpush2.bf16.msra.mxu0 0
    %1319 = vmatprep.subr.bf16.mxu0 0
    %1320 = vmatpush2.bf16.msra.mxu0 0
    %1321 = vmatprep.subr.bf16.mxu0 0
    %1322 = vmatpush2.bf16.msra.mxu0 0
    %1323 = vmatprep.subr.bf16.mxu0 0
    %1324 = vmatpush2.bf16.msra.mxu0 0
    %1325 = vmatprep.subr.bf16.mxu0 0
    %1326 = vmatpush2.bf16.msra.mxu0 0
    %1327 = vmatprep.mubr.bf16.mxu0 0
    %1328 = vmatmul.mubr.bf16.gmra.mxu0 %v1294
    %v1329 = vpop.f32.mrf.mxu0
    %v1330 = vadd.f32 0.0, %v1329
    %v1331 = vpop.f32.mrf.mxu0
    %v1332 = vadd.f32 0.0, %v1331
    %v1333 = vpop.f32.mrf.mxu0
    %v1334 = vpop.f32.mrf.mxu0
    %1335 = vdwg.mxu0
    %1336 = vmatprep.subr.bf16.mxu0 %v774
    %1337 = vmatpush1.bf16.msra.mxu0 %v773
    %1338 = vmatprep.subr.bf16.mxu0 %v770
    %1339 = vmatpush1.bf16.msra.mxu0 %v769
    %1340 = vmatprep.subr.bf16.mxu0 %v766
    %1341 = vmatpush1.bf16.msra.mxu0 %v765
    %1342 = vmatprep.subr.bf16.mxu0 %v762
    %1343 = vmatpush1.bf16.msra.mxu0 %v761
    %1344 = vmatprep.subr.bf16.mxu0 %v758
    %1345 = vmatpush1.bf16.msra.mxu0 %v757
    %1346 = vmatprep.subr.bf16.mxu0 %v754
    %1347 = vmatpush1.bf16.msra.mxu0 %v753
    %1348 = vmatprep.subr.bf16.mxu0 %v750
    %1349 = vmatpush1.bf16.msra.mxu0 %v749
    %1350 = vmatprep.subr.bf16.mxu0 %v746
    %1351 = vmatpush1.bf16.msra.mxu0 %v745
    %1352 = vmatprep.subr.bf16.mxu0 0
    %1353 = vmatpush2.bf16.msra.mxu0 0
    %1354 = vmatprep.subr.bf16.mxu0 0
    %1355 = vmatpush2.bf16.msra.mxu0 0
    %1356 = vmatprep.subr.bf16.mxu0 0
    %1357 = vmatpush2.bf16.msra.mxu0 0
    %1358 = vmatprep.subr.bf16.mxu0 0
    %1359 = vmatpush2.bf16.msra.mxu0 0
    %1360 = vmatprep.subr.bf16.mxu0 0
    %1361 = vmatpush2.bf16.msra.mxu0 0
    %1362 = vmatprep.subr.bf16.mxu0 0
    %1363 = vmatpush2.bf16.msra.mxu0 0
    %1364 = vmatprep.subr.bf16.mxu0 0
    %1365 = vmatpush2.bf16.msra.mxu0 0
    %1366 = vmatprep.subr.bf16.mxu0 0
    %1367 = vmatpush2.bf16.msra.mxu0 0
    %1368 = vmatprep.mubr.bf16.mxu0 0
    %1369 = vmatmul.mubr.bf16.gmra.mxu0 %v1294
    %v1370 = vpop.f32.mrf.mxu0
    %v1371 = vadd.f32 0.0, %v1370
    %v1372 = vpop.f32.mrf.mxu0
    %v1373 = vadd.f32 0.0, %v1372
    %v1374 = vpop.f32.mrf.mxu0
    %v1375 = vpop.f32.mrf.mxu0
    %1376 = vdwg.mxu0
    %v1377 = vadd.f32 %v1290, %v1330
    %v1378 = vadd.f32 %v1291, %v1332
    %v1379 = vadd.f32 %v1292, %v1371
    %v1380 = vadd.f32 %v1293, %v1373
    %v1381 = vxor.u32 %v1377, 2147483648
    %v1382 = vxor.u32 %v1378, 2147483648
    %v1383 = vxor.u32 %v1379, 2147483648
    %v1384 = vmul.f32 %v1381, 1.442695
    %v1385 = vpow.pop %v1384
    %v1386 = vmul.f32 %v1382, 1.442695
    %v1387 = vpow.pop %v1386
    %v1388 = vmul.f32 %v1383, 1.442695
    %v1389 = vpow.pop %v1388
    %v1390 = vadd.f32 %v1385, 1.0
    %v1391 = vadd.f32 %v1387, 1.0
    %v1392 = vadd.f32 %v1389, 1.0
    %v1393 = vrcp.pop %v1390
    %v1394 = vmul.f32 1.0, %v1393
    %v1395 = vrcp.pop %v1391
    %v1396 = vmul.f32 1.0, %v1395
    %v1397 = vrcp.pop %v1392
    %v1398 = vmul.f32 1.0, %v1397
    %v1399 = vtanh.pop %v1380
    %v1400 = vmul.f32 %v1396, %v1280
    %v1401 = vmul.f32 %v1394, %v1399
    %v1402 = vadd.f32 %v1400, %v1401
    %v1403 = vtanh.pop %v1402
    %v1404 = vmul.f32 %v1398, %v1403
    %s1405 = scalar_lea.vmem [#allocation2], 80
    %v1406 = vld [vmem:[%s1405] sm:$0xff]
    %v1407 = vld [vmem:[%s1405 + $0x8] sm:$0xff]
    %v1408 = vunpack.c.l.bf16 %v1406
    %v1409 = vunpack.c.h.bf16 %v1406
    %v1410 = vunpack.c.l.bf16 %v1407
    %v1411 = vunpack.c.h.bf16 %v1407
    %v1412 = vadd.f32 %v1408, %v625
    %v1413 = vadd.f32 %v1409, %v629
    %v1414 = vadd.f32 %v1410, %v633
    %v1415 = vadd.f32 %v1411, %v637
    %v1416 = vpack.c.bf16 %v1404, %v1404
    %1417 = vmatprep.subr.bf16.mxu0 %v772
    %1418 = vmatpush1.bf16.msra.mxu0 %v771
    %1419 = vmatprep.subr.bf16.mxu0 %v768
    %1420 = vmatpush1.bf16.msra.mxu0 %v767
    %1421 = vmatprep.subr.bf16.mxu0 %v764
    %1422 = vmatpush1.bf16.msra.mxu0 %v763
    %1423 = vmatprep.subr.bf16.mxu0 %v760
    %1424 = vmatpush1.bf16.msra.mxu0 %v759
    %1425 = vmatprep.subr.bf16.mxu0 %v756
    %1426 = vmatpush1.bf16.msra.mxu0 %v755
    %1427 = vmatprep.subr.bf16.mxu0 %v752
    %1428 = vmatpush1.bf16.msra.mxu0 %v751
    %1429 = vmatprep.subr.bf16.mxu0 %v748
    %1430 = vmatpush1.bf16.msra.mxu0 %v747
    %1431 = vmatprep.subr.bf16.mxu0 %v744
    %1432 = vmatpush1.bf16.msra.mxu0 %v743
    %1433 = vmatprep.subr.bf16.mxu0 0
    %1434 = vmatpush2.bf16.msra.mxu0 0
    %1435 = vmatprep.subr.bf16.mxu0 0
    %1436 = vmatpush2.bf16.msra.mxu0 0
    %1437 = vmatprep.subr.bf16.mxu0 0
    %1438 = vmatpush2.bf16.msra.mxu0 0
    %1439 = vmatprep.subr.bf16.mxu0 0
    %1440 = vmatpush2.bf16.msra.mxu0 0
    %1441 = vmatprep.subr.bf16.mxu0 0
    %1442 = vmatpush2.bf16.msra.mxu0 0
    %1443 = vmatprep.subr.bf16.mxu0 0
    %1444 = vmatpush2.bf16.msra.mxu0 0
    %1445 = vmatprep.subr.bf16.mxu0 0
    %1446 = vmatpush2.bf16.msra.mxu0 0
    %1447 = vmatprep.subr.bf16.mxu0 0
    %1448 = vmatpush2.bf16.msra.mxu0 0
    %1449 = vmatprep.mubr.bf16.mxu0 0
    %1450 = vmatmul.mubr.bf16.gmra.mxu0 %v1416
    %v1451 = vpop.f32.mrf.mxu0
    %v1452 = vadd.f32 0.0, %v1451
    %v1453 = vpop.f32.mrf.mxu0
    %v1454 = vadd.f32 0.0, %v1453
    %v1455 = vpop.f32.mrf.mxu0
    %v1456 = vpop.f32.mrf.mxu0
    %1457 = vdwg.mxu0
    %1458 = vmatprep.subr.bf16.mxu0 %v774
    %1459 = vmatpush1.bf16.msra.mxu0 %v773
    %1460 = vmatprep.subr.bf16.mxu0 %v770
    %1461 = vmatpush1.bf16.msra.mxu0 %v769
    %1462 = vmatprep.subr.bf16.mxu0 %v766
    %1463 = vmatpush1.bf16.msra.mxu0 %v765
    %1464 = vmatprep.subr.bf16.mxu0 %v762
    %1465 = vmatpush1.bf16.msra.mxu0 %v761
    %1466 = vmatprep.subr.bf16.mxu0 %v758
    %1467 = vmatpush1.bf16.msra.mxu0 %v757
    %1468 = vmatprep.subr.bf16.mxu0 %v754
    %1469 = vmatpush1.bf16.msra.mxu0 %v753
    %1470 = vmatprep.subr.bf16.mxu0 %v750
    %1471 = vmatpush1.bf16.msra.mxu0 %v749
    %1472 = vmatprep.subr.bf16.mxu0 %v746
    %1473 = vmatpush1.bf16.msra.mxu0 %v745
    %1474 = vmatprep.subr.bf16.mxu0 0
    %1475 = vmatpush2.bf16.msra.mxu0 0
    %1476 = vmatprep.subr.bf16.mxu0 0
    %1477 = vmatpush2.bf16.msra.mxu0 0
    %1478 = vmatprep.subr.bf16.mxu0 0
    %1479 = vmatpush2.bf16.msra.mxu0 0
    %1480 = vmatprep.subr.bf16.mxu0 0
    %1481 = vmatpush2.bf16.msra.mxu0 0
    %1482 = vmatprep.subr.bf16.mxu0 0
    %1483 = vmatpush2.bf16.msra.mxu0 0
    %1484 = vmatprep.subr.bf16.mxu0 0
    %1485 = vmatpush2.bf16.msra.mxu0 0
    %1486 = vmatprep.subr.bf16.mxu0 0
    %1487 = vmatpush2.bf16.msra.mxu0 0
    %1488 = vmatprep.subr.bf16.mxu0 0
    %1489 = vmatpush2.bf16.msra.mxu0 0
    %1490 = vmatprep.mubr.bf16.mxu0 0
    %1491 = vmatmul.mubr.bf16.gmra.mxu0 %v1416
    %v1492 = vpop.f32.mrf.mxu0
    %v1493 = vadd.f32 0.0, %v1492
    %v1494 = vpop.f32.mrf.mxu0
    %v1495 = vadd.f32 0.0, %v1494
    %v1496 = vpop.f32.mrf.mxu0
    %v1497 = vpop.f32.mrf.mxu0
    %1498 = vdwg.mxu0
    %v1499 = vadd.f32 %v1412, %v1452
    %v1500 = vadd.f32 %v1413, %v1454
    %v1501 = vadd.f32 %v1414, %v1493
    %v1502 = vadd.f32 %v1415, %v1495
    %v1503 = vxor.u32 %v1499, 2147483648
    %v1504 = vxor.u32 %v1500, 2147483648
    %v1505 = vxor.u32 %v1501, 2147483648
    %v1506 = vmul.f32 %v1503, 1.442695
    %v1507 = vpow.pop %v1506
    %v1508 = vmul.f32 %v1504, 1.442695
    %v1509 = vpow.pop %v1508
    %v1510 = vmul.f32 %v1505, 1.442695
    %v1511 = vpow.pop %v1510
    %v1512 = vadd.f32 %v1507, 1.0
    %v1513 = vadd.f32 %v1509, 1.0
    %v1514 = vadd.f32 %v1511, 1.0
    %v1515 = vrcp.pop %v1512
    %v1516 = vmul.f32 1.0, %v1515
    %v1517 = vrcp.pop %v1513
    %v1518 = vmul.f32 1.0, %v1517
    %v1519 = vrcp.pop %v1514
    %v1520 = vmul.f32 1.0, %v1519
    %v1521 = vtanh.pop %v1502
    %v1522 = vmul.f32 %v1518, %v1402
    %v1523 = vmul.f32 %v1516, %v1521
    %v1524 = vadd.f32 %v1522, %v1523
    %v1525 = vtanh.pop %v1524
    %v1526 = vmul.f32 %v1520, %v1525
    %s1527 = scalar_lea.vmem [#allocation2], 96
    %v1528 = vld [vmem:[%s1527] sm:$0xff]
    %v1529 = vld [vmem:[%s1527 + $0x8] sm:$0xff]
    %v1530 = vunpack.c.l.bf16 %v1528
    %v1531 = vunpack.c.h.bf16 %v1528
    %v1532 = vunpack.c.l.bf16 %v1529
    %v1533 = vunpack.c.h.bf16 %v1529
    %v1534 = vadd.f32 %v1530, %v625
    %v1535 = vadd.f32 %v1531, %v629
    %v1536 = vadd.f32 %v1532, %v633
    %v1537 = vadd.f32 %v1533, %v637
    %v1538 = vpack.c.bf16 %v1526, %v1526
    %1539 = vmatprep.subr.bf16.mxu0 %v772
    %1540 = vmatpush1.bf16.msra.mxu0 %v771
    %1541 = vmatprep.subr.bf16.mxu0 %v768
    %1542 = vmatpush1.bf16.msra.mxu0 %v767
    %1543 = vmatprep.subr.bf16.mxu0 %v764
    %1544 = vmatpush1.bf16.msra.mxu0 %v763
    %1545 = vmatprep.subr.bf16.mxu0 %v760
    %1546 = vmatpush1.bf16.msra.mxu0 %v759
    %1547 = vmatprep.subr.bf16.mxu0 %v756
    %1548 = vmatpush1.bf16.msra.mxu0 %v755
    %1549 = vmatprep.subr.bf16.mxu0 %v752
    %1550 = vmatpush1.bf16.msra.mxu0 %v751
    %1551 = vmatprep.subr.bf16.mxu0 %v748
    %1552 = vmatpush1.bf16.msra.mxu0 %v747
    %1553 = vmatprep.subr.bf16.mxu0 %v744
    %1554 = vmatpush1.bf16.msra.mxu0 %v743
    %1555 = vmatprep.subr.bf16.mxu0 0
    %1556 = vmatpush2.bf16.msra.mxu0 0
    %1557 = vmatprep.subr.bf16.mxu0 0
    %1558 = vmatpush2.bf16.msra.mxu0 0
    %1559 = vmatprep.subr.bf16.mxu0 0
    %1560 = vmatpush2.bf16.msra.mxu0 0
    %1561 = vmatprep.subr.bf16.mxu0 0
    %1562 = vmatpush2.bf16.msra.mxu0 0
    %1563 = vmatprep.subr.bf16.mxu0 0
    %1564 = vmatpush2.bf16.msra.mxu0 0
    %1565 = vmatprep.subr.bf16.mxu0 0
    %1566 = vmatpush2.bf16.msra.mxu0 0
    %1567 = vmatprep.subr.bf16.mxu0 0
    %1568 = vmatpush2.bf16.msra.mxu0 0
    %1569 = vmatprep.subr.bf16.mxu0 0
    %1570 = vmatpush2.bf16.msra.mxu0 0
    %1571 = vmatprep.mubr.bf16.mxu0 0
    %1572 = vmatmul.mubr.bf16.gmra.mxu0 %v1538
    %v1573 = vpop.f32.mrf.mxu0
    %v1574 = vadd.f32 0.0, %v1573
    %v1575 = vpop.f32.mrf.mxu0
    %v1576 = vadd.f32 0.0, %v1575
    %v1577 = vpop.f32.mrf.mxu0
    %v1578 = vpop.f32.mrf.mxu0
    %1579 = vdwg.mxu0
    %1580 = vmatprep.subr.bf16.mxu0 %v774
    %1581 = vmatpush1.bf16.msra.mxu0 %v773
    %1582 = vmatprep.subr.bf16.mxu0 %v770
    %1583 = vmatpush1.bf16.msra.mxu0 %v769
    %1584 = vmatprep.subr.bf16.mxu0 %v766
    %1585 = vmatpush1.bf16.msra.mxu0 %v765
    %1586 = vmatprep.subr.bf16.mxu0 %v762
    %1587 = vmatpush1.bf16.msra.mxu0 %v761
    %1588 = vmatprep.subr.bf16.mxu0 %v758
    %1589 = vmatpush1.bf16.msra.mxu0 %v757
    %1590 = vmatprep.subr.bf16.mxu0 %v754
    %1591 = vmatpush1.bf16.msra.mxu0 %v753
    %1592 = vmatprep.subr.bf16.mxu0 %v750
    %1593 = vmatpush1.bf16.msra.mxu0 %v749
    %1594 = vmatprep.subr.bf16.mxu0 %v746
    %1595 = vmatpush1.bf16.msra.mxu0 %v745
    %1596 = vmatprep.subr.bf16.mxu0 0
    %1597 = vmatpush2.bf16.msra.mxu0 0
    %1598 = vmatprep.subr.bf16.mxu0 0
    %1599 = vmatpush2.bf16.msra.mxu0 0
    %1600 = vmatprep.subr.bf16.mxu0 0
    %1601 = vmatpush2.bf16.msra.mxu0 0
    %1602 = vmatprep.subr.bf16.mxu0 0
    %1603 = vmatpush2.bf16.msra.mxu0 0
    %1604 = vmatprep.subr.bf16.mxu0 0
    %1605 = vmatpush2.bf16.msra.mxu0 0
    %1606 = vmatprep.subr.bf16.mxu0 0
    %1607 = vmatpush2.bf16.msra.mxu0 0
    %1608 = vmatprep.subr.bf16.mxu0 0
    %1609 = vmatpush2.bf16.msra.mxu0 0
    %1610 = vmatprep.subr.bf16.mxu0 0
    %1611 = vmatpush2.bf16.msra.mxu0 0
    %1612 = vmatprep.mubr.bf16.mxu0 0
    %1613 = vmatmul.mubr.bf16.gmra.mxu0 %v1538
    %v1614 = vpop.f32.mrf.mxu0
    %v1615 = vadd.f32 0.0, %v1614
    %v1616 = vpop.f32.mrf.mxu0
    %v1617 = vadd.f32 0.0, %v1616
    %v1618 = vpop.f32.mrf.mxu0
    %v1619 = vpop.f32.mrf.mxu0
    %1620 = vdwg.mxu0
    %v1621 = vadd.f32 %v1534, %v1574
    %v1622 = vadd.f32 %v1535, %v1576
    %v1623 = vadd.f32 %v1536, %v1615
    %v1624 = vadd.f32 %v1537, %v1617
    %v1625 = vxor.u32 %v1621, 2147483648
    %v1626 = vxor.u32 %v1622, 2147483648
    %v1627 = vxor.u32 %v1623, 2147483648
    %v1628 = vmul.f32 %v1625, 1.442695
    %v1629 = vpow.pop %v1628
    %v1630 = vmul.f32 %v1626, 1.442695
    %v1631 = vpow.pop %v1630
    %v1632 = vmul.f32 %v1627, 1.442695
    %v1633 = vpow.pop %v1632
    %v1634 = vadd.f32 %v1629, 1.0
    %v1635 = vadd.f32 %v1631, 1.0
    %v1636 = vadd.f32 %v1633, 1.0
    %v1637 = vrcp.pop %v1634
    %v1638 = vmul.f32 1.0, %v1637
    %v1639 = vrcp.pop %v1635
    %v1640 = vmul.f32 1.0, %v1639
    %v1641 = vrcp.pop %v1636
    %v1642 = vmul.f32 1.0, %v1641
    %v1643 = vtanh.pop %v1624
    %v1644 = vmul.f32 %v1640, %v1524
    %v1645 = vmul.f32 %v1638, %v1643
    %v1646 = vadd.f32 %v1644, %v1645
    %v1647 = vtanh.pop %v1646
    %v1648 = vmul.f32 %v1642, %v1647
    %s1649 = scalar_lea.vmem [#allocation2], 112
    %v1650 = vld [vmem:[%s1649] sm:$0xff]
    %v1651 = vld [vmem:[%s1649 + $0x8] sm:$0xff]
    %v1652 = vunpack.c.l.bf16 %v1650
    %v1653 = vunpack.c.h.bf16 %v1650
    %v1654 = vunpack.c.l.bf16 %v1651
    %v1655 = vunpack.c.h.bf16 %v1651
    %v1656 = vadd.f32 %v1652, %v625
    %v1657 = vadd.f32 %v1653, %v629
    %v1658 = vadd.f32 %v1654, %v633
    %v1659 = vadd.f32 %v1655, %v637
    %v1660 = vpack.c.bf16 %v1648, %v1648
    %1661 = vmatprep.subr.bf16.mxu0 %v772
    %1662 = vmatpush1.bf16.msra.mxu0 %v771
    %1663 = vmatprep.subr.bf16.mxu0 %v768
    %1664 = vmatpush1.bf16.msra.mxu0 %v767
    %1665 = vmatprep.subr.bf16.mxu0 %v764
    %1666 = vmatpush1.bf16.msra.mxu0 %v763
    %1667 = vmatprep.subr.bf16.mxu0 %v760
    %1668 = vmatpush1.bf16.msra.mxu0 %v759
    %1669 = vmatprep.subr.bf16.mxu0 %v756
    %1670 = vmatpush1.bf16.msra.mxu0 %v755
    %1671 = vmatprep.subr.bf16.mxu0 %v752
    %1672 = vmatpush1.bf16.msra.mxu0 %v751
    %1673 = vmatprep.subr.bf16.mxu0 %v748
    %1674 = vmatpush1.bf16.msra.mxu0 %v747
    %1675 = vmatprep.subr.bf16.mxu0 %v744
    %1676 = vmatpush1.bf16.msra.mxu0 %v743
    %1677 = vmatprep.subr.bf16.mxu0 0
    %1678 = vmatpush2.bf16.msra.mxu0 0
    %1679 = vmatprep.subr.bf16.mxu0 0
    %1680 = vmatpush2.bf16.msra.mxu0 0
    %1681 = vmatprep.subr.bf16.mxu0 0
    %1682 = vmatpush2.bf16.msra.mxu0 0
    %1683 = vmatprep.subr.bf16.mxu0 0
    %1684 = vmatpush2.bf16.msra.mxu0 0
    %1685 = vmatprep.subr.bf16.mxu0 0
    %1686 = vmatpush2.bf16.msra.mxu0 0
    %1687 = vmatprep.subr.bf16.mxu0 0
    %1688 = vmatpush2.bf16.msra.mxu0 0
    %1689 = vmatprep.subr.bf16.mxu0 0
    %1690 = vmatpush2.bf16.msra.mxu0 0
    %1691 = vmatprep.subr.bf16.mxu0 0
    %1692 = vmatpush2.bf16.msra.mxu0 0
    %1693 = vmatprep.mubr.bf16.mxu0 0
    %1694 = vmatmul.mubr.bf16.gmra.mxu0 %v1660
    %v1695 = vpop.f32.mrf.mxu0
    %v1696 = vadd.f32 0.0, %v1695
    %v1697 = vpop.f32.mrf.mxu0
    %v1698 = vadd.f32 0.0, %v1697
    %v1699 = vpop.f32.mrf.mxu0
    %v1700 = vpop.f32.mrf.mxu0
    %1701 = vdwg.mxu0
    %1702 = vmatprep.subr.bf16.mxu0 %v774
    %1703 = vmatpush1.bf16.msra.mxu0 %v773
    %1704 = vmatprep.subr.bf16.mxu0 %v770
    %1705 = vmatpush1.bf16.msra.mxu0 %v769
    %1706 = vmatprep.subr.bf16.mxu0 %v766
    %1707 = vmatpush1.bf16.msra.mxu0 %v765
    %1708 = vmatprep.subr.bf16.mxu0 %v762
    %1709 = vmatpush1.bf16.msra.mxu0 %v761
    %1710 = vmatprep.subr.bf16.mxu0 %v758
    %1711 = vmatpush1.bf16.msra.mxu0 %v757
    %1712 = vmatprep.subr.bf16.mxu0 %v754
    %1713 = vmatpush1.bf16.msra.mxu0 %v753
    %1714 = vmatprep.subr.bf16.mxu0 %v750
    %1715 = vmatpush1.bf16.msra.mxu0 %v749
    %1716 = vmatprep.subr.bf16.mxu0 %v746
    %1717 = vmatpush1.bf16.msra.mxu0 %v745
    %1718 = vmatprep.subr.bf16.mxu0 0
    %1719 = vmatpush2.bf16.msra.mxu0 0
    %1720 = vmatprep.subr.bf16.mxu0 0
    %1721 = vmatpush2.bf16.msra.mxu0 0
    %1722 = vmatprep.subr.bf16.mxu0 0
    %1723 = vmatpush2.bf16.msra.mxu0 0
    %1724 = vmatprep.subr.bf16.mxu0 0
    %1725 = vmatpush2.bf16.msra.mxu0 0
    %1726 = vmatprep.subr.bf16.mxu0 0
    %1727 = vmatpush2.bf16.msra.mxu0 0
    %1728 = vmatprep.subr.bf16.mxu0 0
    %1729 = vmatpush2.bf16.msra.mxu0 0
    %1730 = vmatprep.subr.bf16.mxu0 0
    %1731 = vmatpush2.bf16.msra.mxu0 0
    %1732 = vmatprep.subr.bf16.mxu0 0
    %1733 = vmatpush2.bf16.msra.mxu0 0
    %1734 = vmatprep.mubr.bf16.mxu0 0
    %1735 = vmatmul.mubr.bf16.gmra.mxu0 %v1660
    %v1736 = vpop.f32.mrf.mxu0
    %v1737 = vadd.f32 0.0, %v1736
    %v1738 = vpop.f32.mrf.mxu0
    %v1739 = vadd.f32 0.0, %v1738
    %v1740 = vpop.f32.mrf.mxu0
    %v1741 = vpop.f32.mrf.mxu0
    %1742 = vdwg.mxu0
    %v1743 = vadd.f32 %v1656, %v1696
    %v1744 = vadd.f32 %v1657, %v1698
    %v1745 = vadd.f32 %v1658, %v1737
    %v1746 = vadd.f32 %v1659, %v1739
    %v1747 = vxor.u32 %v1743, 2147483648
    %v1748 = vxor.u32 %v1744, 2147483648
    %v1749 = vxor.u32 %v1745, 2147483648
    %v1750 = vmul.f32 %v1747, 1.442695
    %v1751 = vpow.pop %v1750
    %v1752 = vmul.f32 %v1748, 1.442695
    %v1753 = vpow.pop %v1752
    %v1754 = vmul.f32 %v1749, 1.442695
    %v1755 = vpow.pop %v1754
    %v1756 = vadd.f32 %v1751, 1.0
    %v1757 = vadd.f32 %v1753, 1.0
    %v1758 = vadd.f32 %v1755, 1.0
    %v1759 = vrcp.pop %v1756
    %v1760 = vmul.f32 1.0, %v1759
    %v1761 = vrcp.pop %v1757
    %v1762 = vmul.f32 1.0, %v1761
    %v1763 = vrcp.pop %v1758
    %v1764 = vmul.f32 1.0, %v1763
    %v1765 = vtanh.pop %v1746
    %v1766 = vmul.f32 %v1762, %v1646
    %v1767 = vmul.f32 %v1760, %v1765
    %v1768 = vadd.f32 %v1766, %v1767
    %v1769 = vtanh.pop %v1768
    %v1770 = vmul.f32 %v1764, %v1769
    %1771 = vst [vmem:[#allocation3] sm:$0xff] %v1770
    %1772 = vst [vmem:[#allocation4] sm:$0xff] %v1768
    // Predicated region
    $region34: #{tpu_custom_call.1} parent=1 // pred_check
      %p1773 = pneg %p60
    $region35: #{tpu_custom_call.1} parent=1 // pred_check_branch
      %1775 = sbr.rel (%p1773) target = $region37
    $region36: #{tpu_custom_call.1} parent=1 // pred_region
      %1776 = vst [vmem:[#allocation11] sm:$0xff] %v1770
    $region37: #{tpu_custom_call.1} parent=1 // pred_fallthru
      _
    // Predicated region
    $region38: #{tpu_custom_call.1} parent=1 // pred_check
      _
    $region39: #{tpu_custom_call.1} parent=1 // pred_check_branch
      %1778 = sbr.rel (0) target = $region41
    $region40: #{tpu_custom_call.1} parent=1 // pred_region
      %s1780 = ssub.s32 128, 128
      %1781 = vsyncadd [#allocation7], %s1780
      %s1783 = sshll.u32 [#allocation11], 4
      %s1784 = int_to_ptr.vmem [resolvable:$true] %s1783
      %1786 = dma.vmem_to_hbm [thread:$0]  %s1784, 128, %s4, [#allocation7]
    $region41: #{tpu_custom_call.1} parent=1 // pred_fallthru
      _
    // Predicated region
    $region42: #{tpu_custom_call.1} parent=1 // pred_check
      _
    $region43: #{tpu_custom_call.1} parent=1 // pred_check_branch
      %1788 = sbr.rel (0) target = $region45
    $region44: #{tpu_custom_call.1} parent=1 // pred_region
      %1789 = dma.done [#allocation7], 128
    $region45: #{tpu_custom_call.1} parent=1 // pred_fallthru
      _
    %1790 = vsyncpa [#allocation6], 1
    %1791 = vsyncpa [#allocation9], 1
    %1792 = vsyncpa [#allocation7], 1

</llo_original>
